<compile_context>
chip_gen: v7x
topology: tpu7x:2x2x1
jax: 0.10.0
libtpu: 0.0.40
codegen_flags: <defaults>
</compile_context>

<pallas_src>
import jax
import jax.numpy as jnp
import numpy as np
from jax.experimental import pallas as pl
from jax.experimental.pallas import tpu as pltpu

# ---- module constants (verbatim from the PyTorch file) ----
seq_len = 60
k1 = int((seq_len - 2) / 2 + 1)          # 30
k2 = int((seq_len - 2) / 3 + 1)          # 20
k3 = int((seq_len - 2) / 4 + 1)          # 15
num_classes = 6


def _conv_out_h(stride):
    # Conv2d with kernel height 2, stride `stride`, no padding.
    return (seq_len - 2) // stride + 1


# (stride, conv_output_height) per branch.  MaxPool kernels k1/k2/k3 equal the conv
# output heights, so each branch pools down to a single value per channel.
BRANCHES = ((2, _conv_out_h(2)), (3, _conv_out_h(3)), (4, _conv_out_h(4)))
assert (k1, k2, k3) == tuple(h for _, h in BRANCHES)

OUT_CHANNELS = 6                       # 3 branches * 2 conv channels == fc in_features
NC_PAD = 128                           # fc output padded to one lane width (unmasked vst)
SEQ_PAD = ((seq_len + 7) // 8) * 8     # sequence padded to a sublane-tile multiple (64)


def _build_mask_bias():
    # mask[t, 2b+c] == 0.0 iff t is a valid conv start position for branch b
    # (t % stride == 0 and t <= seq_len-2); -inf elsewhere (incl. seq padding rows and
    # the row the roll wraps garbage into).
    m = np.full((SEQ_PAD, OUT_CHANNELS), -np.inf, dtype=np.float32)
    for b, (stride, h_out) in enumerate(BRANCHES):
        for h in range(h_out):
            m[h * stride, 2 * b:2 * b + 2] = 0.0
    return m


_MASK_BIAS = _build_mask_bias()


# ---------------------------------------------------------------------------
# Pallas kernel: fused embedding + conv (one bf16 matmul + roll) + maxpool + relu + fc
# ---------------------------------------------------------------------------
def textcnn_kernel(tok_ref, lut0_ref, lut1_ref, mask_ref, wfc_ref, bfc_ref, out_ref):
    # tok_ref : [CB*S_pad, 1] int32   token[t], rows flattened as (example, position)
    # lut0_ref: [Vpad, 6]     bf16    emb @ W[kh=0] + conv bias   (bias folded in)
    # lut1_ref: [Vpad, 6]     bf16    emb @ W[kh=1]
    # mask_ref: [S_pad, 6]    f32     0 at valid conv start positions, -inf elsewhere
    # wfc_ref : [6, 128]      f32     fc weight [in, out] padded to 128 lanes
    # bfc_ref : [1, 128]      f32     fc bias padded to 128 lanes
    # out_ref : [CB, 128]     f32     lane-dense padded logits for this batch chunk
    n_rows = tok_ref.shape[0]
    s_pad, n_feat = mask_ref.shape
    cb = out_ref.shape[0]
    vpad = lut0_ref.shape[0]

    # One-hot over token[t] only.  bf16 0/1 is exact; half the footprint of f32 and the
    # matmul below runs at native bf16 MXU rate.
    col = jax.lax.broadcasted_iota(jnp.int32, (n_rows, vpad), 1)
    onehot = (col == tok_ref[...]).astype(jnp.bfloat16)               # [N, Vpad]

    # y0[t] = emb[tok[t]] . W_kh0 + bias ;  y1[t] = emb[tok[t]] . W_kh1
    y0 = jnp.dot(onehot, lut0_ref[...], preferred_element_type=jnp.float32)   # [N, 6]
    y1 = jnp.dot(onehot, lut1_ref[...], preferred_element_type=jnp.float32)   # [N, 6]

    # Shift identity: conv output at start t needs token t+1's kernel-row-1 term.
    # Sublane roll by -1 (shift = N-1, np.roll convention); the wrapped / cross-example
    # rows land on position S_pad-1 which the -inf mask discards.
    y1_next = pltpu.roll(y1, n_rows - 1, 0)                           # [N, 6]

    # Fused MaxPool (strided-start additive mask) + ReLU (bias already inside lut0).
    z = (y0 + y1_next).reshape(cb, s_pad, n_feat) + mask_ref[...][None, :, :]
    feats = jnp.maximum(jnp.max(z, axis=1), 0.0)                      # [CB, 6]

    # Final Linear(6, num_classes) on the VPU (a 6x6 MXU call is pure latency).
    wfc = wfc_ref[...]                                                # [6, 128]
    acc = bfc_ref[...]                                                # [1, 128] -> bcast
    for k in range(n_feat):                                           # static, 6 iters
        acc = acc + feats[:, k:k + 1] * wfc[k:k + 1, :]
    out_ref[...] = acc


# ---------------------------------------------------------------------------
# Wrapper (layout prep + pallas_call plumbing)
# ---------------------------------------------------------------------------
def _pick_chunk(b_pad):
    # Largest chunk (<= 64 examples, ~a dozen MiB of per-step temporaries) dividing the
    # padded batch, preferring a grid of >= 2 steps so both v7x TensorCores get work
    # under "parallel" semantics.  b_pad is always a multiple of 8.
    for cb in (64, 32, 16, 8):
        if b_pad % cb == 0 and b_pad // cb >= 2:
            return cb
    return min(b_pad, 64)      # tiny batches: one step covering the whole padded batch


@jax.jit
def textcnn_forward(x_tokens, params):
    emb, w1, b1, w2, b2, w3, b3, wfc, bfc = params
    B, S = x_tokens.shape
    assert S == seq_len
    V1, E = emb.shape
    vpad = ((V1 + 127) // 128) * 128

    # ---- precontract embedding with the conv weights (tiny, done once by XLA) ----
    emb_pad = jnp.zeros((vpad, E), jnp.float32).at[:V1].set(emb.astype(jnp.float32))

    def stack_kh(kh):
        # torch Conv2d weight [oc=2, ic=1, kh=2, kw=E] -> [E, 2] per branch -> [E, 6]
        return jnp.concatenate(
            [w[:, 0, kh, :].astype(jnp.float32).T for w in (w1, w2, w3)], axis=1)

    bconv = jnp.concatenate([b1, b2, b3]).reshape(1, OUT_CHANNELS).astype(jnp.float32)
    lut0 = (emb_pad @ stack_kh(0) + bconv).astype(jnp.bfloat16)       # bias folded in
    lut1 = (emb_pad @ stack_kh(1)).astype(jnp.bfloat16)

    # torch Linear weight layout is [out, in]; kernel wants [in, out] padded to 128.
    wfc_pad = jnp.zeros((OUT_CHANNELS, NC_PAD), jnp.float32).at[:, :num_classes].set(
        wfc.astype(jnp.float32).T)
    bfc_pad = jnp.zeros((1, NC_PAD), jnp.float32).at[0, :num_classes].set(
        bfc.astype(jnp.float32))
    mask_bias = jnp.asarray(_MASK_BIAS)                               # [S_pad, 6]

    # ---- token stream: pad batch to a sublane multiple, seq to S_pad, flatten rows ----
    # Padded seq rows (t >= S) and t == S-1 are never valid conv starts -> -inf mask.
    # Padded batch rows are sliced off at the end.
    b_pad = ((B + 7) // 8) * 8
    tok = jnp.zeros((b_pad, SEQ_PAD), jnp.int32).at[:B, :S].set(x_tokens.astype(jnp.int32))
    tok_col = tok.reshape(b_pad * SEQ_PAD, 1)

    cb = _pick_chunk(b_pad)
    fixed = lambda i: (0, 0)

    out_pad = pl.pallas_call(
        textcnn_kernel,
        out_shape=jax.ShapeDtypeStruct((b_pad, NC_PAD), jnp.float32),
        grid=(b_pad // cb,),
        in_specs=[
            pl.BlockSpec((cb * SEQ_PAD, 1), lambda i: (i, 0)),        # token chunk
            pl.BlockSpec((vpad, OUT_CHANNELS), fixed),                # LUT kh=0 (+bias)
            pl.BlockSpec((vpad, OUT_CHANNELS), fixed),                # LUT kh=1
            pl.BlockSpec((SEQ_PAD, OUT_CHANNELS), fixed),             # pooling mask
            pl.BlockSpec((OUT_CHANNELS, NC_PAD), fixed),              # fc weight (padded)
            pl.BlockSpec((1, NC_PAD), fixed),                         # fc bias (padded)
        ],
        out_specs=pl.BlockSpec((cb, NC_PAD), lambda i: (i, 0)),       # lane-dense output
        compiler_params=pltpu.CompilerParams(
            dimension_semantics=("parallel",),                        # megacore sharding
            vmem_limit_bytes=32 * 1024 * 1024),                       # > v5e's 16 MiB default
    )(tok_col, lut0, lut1, mask_bias, wfc_pad, bfc_pad)

    return out_pad[:B, :num_classes]


# ---------------------------------------------------------------------------
# Deterministic parameter init (torch layouts, shapes follow nn.Module __init__)
# ---------------------------------------------------------------------------
def init_params(key, vocab_size, emb_size):
    ks = jax.random.split(key, 9)
    emb = 0.1 * jax.random.normal(ks[0], (vocab_size + 1, emb_size), jnp.float32)

    def conv_w(k):   # torch Conv2d weight layout: [oc=2, ic=1, kh=2, kw=emb_size]
        return 0.1 * jax.random.normal(k, (2, 1, 2, emb_size), jnp.float32)

    w1 = conv_w(ks[1]); b1 = 0.1 * jax.random.normal(ks[2], (2,), jnp.float32)
    w2 = conv_w(ks[3]); b2 = 0.1 * jax.random.normal(ks[4], (2,), jnp.float32)
    w3 = conv_w(ks[5]); b3 = 0.1 * jax.random.normal(ks[6], (2,), jnp.float32)
    # torch Linear weight layout: [out_features, in_features]
    wfc = 0.1 * jax.random.normal(ks[7], (num_classes, OUT_CHANNELS), jnp.float32)
    bfc = 0.1 * jax.random.normal(ks[8], (num_classes,), jnp.float32)
    return (emb, w1, b1, w2, b2, w3, b3, wfc, bfc)


# ---------------------------------------------------------------------------
# Pure-JAX reference (same math as the PyTorch module, f32, for correctness check)
# ---------------------------------------------------------------------------
def reference_forward(x_tokens, params):
    emb, w1, b1, w2, b2, w3, b3, wfc, bfc = params
    x = emb[x_tokens].astype(jnp.float32)                             # [B, S, E]
    feats = []
    for (stride, h_out), w, b in zip(BRANCHES, (w1, w2, w3), (b1, b2, b3)):
        wk = w[:, 0, :, :]                                            # [oc=2, kh=2, E]
        conv = jnp.stack(
            [x[:, h * stride, :] @ wk[:, 0, :].T
             + x[:, h * stride + 1, :] @ wk[:, 1, :].T
             for h in range(h_out)], axis=1)                          # [B, H, 2]
        feats.append(jnp.maximum(jnp.max(conv, axis=1) + b[None, :], 0.0))
    flat = jnp.concatenate(feats, axis=1)                             # [B, 6] torch order
    return flat @ wfc.T + bfc[None, :]


if __name__ == "__main__":
    vocab_size = 50
    emb_size = 16
    batch = 2

    key = jax.random.PRNGKey(0)
    kp, kx = jax.random.split(key)
    params = init_params(kp, vocab_size, emb_size)
    x_tokens = jax.random.randint(kx, (batch, seq_len), 0, vocab_size + 1,
                                  dtype=jnp.int32)

    out = jax.block_until_ready(textcnn_forward(x_tokens, params))
    ref = reference_forward(x_tokens, params)
    # Tolerance relaxed vs a pure-f32 run because the conv LUTs are bf16-quantized in
    # the kernel (per perf review); observed error is O(1e-3) absolute on these scales.
    np.testing.assert_allclose(np.asarray(out), np.asarray(ref),
                               rtol=1e-2, atol=5e-3)
    assert out.shape == (batch, num_classes)
    print("KERNEL_OK")
</pallas_src>

<mosaic_0001>
module attributes {stable_mosaic.version = 11 : i64} {
  func.func @textcnn_kernel(%arg0: i32, %arg1: memref<512x1xi32, #tpu.memory_space<vmem>>, %arg2: memref<128x6xbf16, #tpu.memory_space<vmem>>, %arg3: memref<128x6xbf16, #tpu.memory_space<vmem>>, %arg4: memref<64x6xf32, #tpu.memory_space<vmem>>, %arg5: memref<6x128xf32, #tpu.memory_space<vmem>>, %arg6: memref<1x128xf32, #tpu.memory_space<vmem>>, %arg7: memref<8x128xf32, #tpu.memory_space<vmem>>) attributes {dimension_semantics = [#tpu.dimension_semantics<parallel>], iteration_bounds = array<i64: 1>, scalar_prefetch = 0 : i64, scratch_operands = 0 : i64, tpu.core_type = #tpu.core_type<tc>, window_params = [{transform_indices = @transform_0, window_bounds = array<i64: 512, 1>}, {pipeline_mode = #tpu.pipeline_mode<synchronous>, transform_indices = @transform_1, window_bounds = array<i64: 128, 6>}, {pipeline_mode = #tpu.pipeline_mode<synchronous>, transform_indices = @transform_2, window_bounds = array<i64: 128, 6>}, {pipeline_mode = #tpu.pipeline_mode<synchronous>, transform_indices = @transform_3, window_bounds = array<i64: 64, 6>}, {pipeline_mode = #tpu.pipeline_mode<synchronous>, transform_indices = @transform_4, window_bounds = array<i64: 6, 128>}, {pipeline_mode = #tpu.pipeline_mode<synchronous>, transform_indices = @transform_5, window_bounds = array<i64: 1, 128>}, {transform_indices = @transform_6, window_bounds = array<i64: 8, 128>}]} {
    %0 = tpu.iota {dimensions = array<i32: 1>} : vector<512x128xi32>
    %c0 = arith.constant 0 : index
    %c0_0 = arith.constant 0 : index
    %1 = vector.load %arg1[%c0, %c0_0] : memref<512x1xi32, #tpu.memory_space<vmem>>, vector<512x1xi32>
    %2 = vector.broadcast %1 : vector<512x1xi32> to vector<512x128xi32>
    %3 = arith.cmpi eq, %0, %2 : vector<512x128xi32>
    %4 = arith.extui %3 : vector<512x128xi1> to vector<512x128xi32>
    %5 = arith.sitofp %4 : vector<512x128xi32> to vector<512x128xf32>
    %6 = arith.truncf %5 : vector<512x128xf32> to vector<512x128xbf16>
    %c0_1 = arith.constant 0 : index
    %c0_2 = arith.constant 0 : index
    %7 = vector.load %arg2[%c0_1, %c0_2] : memref<128x6xbf16, #tpu.memory_space<vmem>>, vector<128x6xbf16>
    %cst = arith.constant dense<0.000000e+00> : vector<512x6xf32>
    %8 = tpu.matmul %6, %7, %cst {dimension_numbers = #tpu.dot_dimension_numbers<[1], [0], [0], [1], [0, 0, 1, 1], [], []>} : vector<512x128xbf16>, vector<128x6xbf16>, vector<512x6xf32> -> vector<512x6xf32>
    %c0_3 = arith.constant 0 : index
    %c0_4 = arith.constant 0 : index
    %9 = vector.load %arg3[%c0_3, %c0_4] : memref<128x6xbf16, #tpu.memory_space<vmem>>, vector<128x6xbf16>
    %cst_5 = arith.constant dense<0.000000e+00> : vector<512x6xf32>
    %10 = tpu.matmul %6, %9, %cst_5 {dimension_numbers = #tpu.dot_dimension_numbers<[1], [0], [0], [1], [0, 0, 1, 1], [], []>} : vector<512x128xbf16>, vector<128x6xbf16>, vector<512x6xf32> -> vector<512x6xf32>
    %c511_i32 = arith.constant 511 : i32
    %11 = tpu.dynamic_rotate %10 by %c511_i32 dim 0 : vector<512x6xf32>, i32 -> vector<512x6xf32>
    %12 = arith.addf %8, %11 : vector<512x6xf32>
    %13 = vector.shape_cast %12 : vector<512x6xf32> to vector<8x64x6xf32>
    %c0_6 = arith.constant 0 : index
    %c0_7 = arith.constant 0 : index
    %14 = vector.load %arg4[%c0_6, %c0_7] : memref<64x6xf32, #tpu.memory_space<vmem>>, vector<64x6xf32>
    %15 = vector.shape_cast %14 : vector<64x6xf32> to vector<1x64x6xf32>
    %16 = vector.broadcast %15 : vector<1x64x6xf32> to vector<8x64x6xf32>
    %17 = arith.addf %13, %16 : vector<8x64x6xf32>
    %cst_8 = arith.constant dense<0xFF800000> : vector<8x6xf32>
    %18 = vector.multi_reduction <maximumf>, %17, %cst_8 [1] : vector<8x64x6xf32> to vector<8x6xf32>
    %cst_9 = arith.constant 0.000000e+00 : f32
    %19 = vector.broadcast %cst_9 : f32 to vector<8x6xf32>
    %20 = arith.maximumf %18, %19 : vector<8x6xf32>
    %c0_10 = arith.constant 0 : index
    %c0_11 = arith.constant 0 : index
    %21 = vector.load %arg5[%c0_10, %c0_11] : memref<6x128xf32, #tpu.memory_space<vmem>>, vector<6x128xf32>
    %c0_12 = arith.constant 0 : index
    %c0_13 = arith.constant 0 : index
    %22 = vector.load %arg6[%c0_12, %c0_13] : memref<1x128xf32, #tpu.memory_space<vmem>>, vector<1x128xf32>
    %23 = vector.extract_strided_slice %20 {offsets = [0, 0], sizes = [8, 1], strides = [1, 1]} : vector<8x6xf32> to vector<8x1xf32>
    %24 = vector.extract_strided_slice %21 {offsets = [0, 0], sizes = [1, 128], strides = [1, 1]} : vector<6x128xf32> to vector<1x128xf32>
    %25 = vector.broadcast %23 : vector<8x1xf32> to vector<8x128xf32>
    %26 = vector.broadcast %24 : vector<1x128xf32> to vector<8x128xf32>
    %27 = arith.mulf %25, %26 : vector<8x128xf32>
    %28 = vector.broadcast %22 : vector<1x128xf32> to vector<8x128xf32>
    %29 = arith.addf %28, %27 : vector<8x128xf32>
    %30 = vector.extract_strided_slice %20 {offsets = [0, 1], sizes = [8, 1], strides = [1, 1]} : vector<8x6xf32> to vector<8x1xf32>
    %31 = vector.extract_strided_slice %21 {offsets = [1, 0], sizes = [1, 128], strides = [1, 1]} : vector<6x128xf32> to vector<1x128xf32>
    %32 = vector.broadcast %30 : vector<8x1xf32> to vector<8x128xf32>
    %33 = vector.broadcast %31 : vector<1x128xf32> to vector<8x128xf32>
    %34 = arith.mulf %32, %33 : vector<8x128xf32>
    %35 = arith.addf %29, %34 : vector<8x128xf32>
    %36 = vector.extract_strided_slice %20 {offsets = [0, 2], sizes = [8, 1], strides = [1, 1]} : vector<8x6xf32> to vector<8x1xf32>
    %37 = vector.extract_strided_slice %21 {offsets = [2, 0], sizes = [1, 128], strides = [1, 1]} : vector<6x128xf32> to vector<1x128xf32>
    %38 = vector.broadcast %36 : vector<8x1xf32> to vector<8x128xf32>
    %39 = vector.broadcast %37 : vector<1x128xf32> to vector<8x128xf32>
    %40 = arith.mulf %38, %39 : vector<8x128xf32>
    %41 = arith.addf %35, %40 : vector<8x128xf32>
    %42 = vector.extract_strided_slice %20 {offsets = [0, 3], sizes = [8, 1], strides = [1, 1]} : vector<8x6xf32> to vector<8x1xf32>
    %43 = vector.extract_strided_slice %21 {offsets = [3, 0], sizes = [1, 128], strides = [1, 1]} : vector<6x128xf32> to vector<1x128xf32>
    %44 = vector.broadcast %42 : vector<8x1xf32> to vector<8x128xf32>
    %45 = vector.broadcast %43 : vector<1x128xf32> to vector<8x128xf32>
    %46 = arith.mulf %44, %45 : vector<8x128xf32>
    %47 = arith.addf %41, %46 : vector<8x128xf32>
    %48 = vector.extract_strided_slice %20 {offsets = [0, 4], sizes = [8, 1], strides = [1, 1]} : vector<8x6xf32> to vector<8x1xf32>
    %49 = vector.extract_strided_slice %21 {offsets = [4, 0], sizes = [1, 128], strides = [1, 1]} : vector<6x128xf32> to vector<1x128xf32>
    %50 = vector.broadcast %48 : vector<8x1xf32> to vector<8x128xf32>
    %51 = vector.broadcast %49 : vector<1x128xf32> to vector<8x128xf32>
    %52 = arith.mulf %50, %51 : vector<8x128xf32>
    %53 = arith.addf %47, %52 : vector<8x128xf32>
    %54 = vector.extract_strided_slice %20 {offsets = [0, 5], sizes = [8, 1], strides = [1, 1]} : vector<8x6xf32> to vector<8x1xf32>
    %55 = vector.extract_strided_slice %21 {offsets = [5, 0], sizes = [1, 128], strides = [1, 1]} : vector<6x128xf32> to vector<1x128xf32>
    %56 = vector.broadcast %54 : vector<8x1xf32> to vector<8x128xf32>
    %57 = vector.broadcast %55 : vector<1x128xf32> to vector<8x128xf32>
    %58 = arith.mulf %56, %57 : vector<8x128xf32>
    %59 = arith.addf %53, %58 : vector<8x128xf32>
    %c0_14 = arith.constant 0 : index
    %c0_15 = arith.constant 0 : index
    %60 = vector.load %arg7[%c0_14, %c0_15] : memref<8x128xf32, #tpu.memory_space<vmem>>, vector<8x128xf32>
    tpu.vector_store %arg7[%c0_14, %c0_15], %59 {strides = array<i32>} : memref<8x128xf32, #tpu.memory_space<vmem>>, vector<8x128xf32>,
    return
  }
  func.func @transform_0(%arg0: i32) -> (i32, i32) {
    %c0_i32 = arith.constant 0 : i32
    %c0_i32_0 = arith.constant 0 : i32
    return %arg0, %c0_i32 : i32, i32
  }
  func.func @transform_1(%arg0: i32) -> (i32, i32) {
    %c0_i32 = arith.constant 0 : i32
    %c0_i32_0 = arith.constant 0 : i32
    %c0_i32_1 = arith.constant 0 : i32
    return %c0_i32, %c0_i32_0 : i32, i32
  }
  func.func @transform_2(%arg0: i32) -> (i32, i32) {
    %c0_i32 = arith.constant 0 : i32
    %c0_i32_0 = arith.constant 0 : i32
    %c0_i32_1 = arith.constant 0 : i32
    return %c0_i32, %c0_i32_0 : i32, i32
  }
  func.func @transform_3(%arg0: i32) -> (i32, i32) {
    %c0_i32 = arith.constant 0 : i32
    %c0_i32_0 = arith.constant 0 : i32
    %c0_i32_1 = arith.constant 0 : i32
    return %c0_i32, %c0_i32_0 : i32, i32
  }
  func.func @transform_4(%arg0: i32) -> (i32, i32) {
    %c0_i32 = arith.constant 0 : i32
    %c0_i32_0 = arith.constant 0 : i32
    %c0_i32_1 = arith.constant 0 : i32
    return %c0_i32, %c0_i32_0 : i32, i32
  }
  func.func @transform_5(%arg0: i32) -> (i32, i32) {
    %c0_i32 = arith.constant 0 : i32
    %c0_i32_0 = arith.constant 0 : i32
    %c0_i32_1 = arith.constant 0 : i32
    return %c0_i32, %c0_i32_0 : i32, i32
  }
  func.func @transform_6(%arg0: i32) -> (i32, i32) {
    %c0_i32 = arith.constant 0 : i32
    %c0_i32_0 = arith.constant 0 : i32
    return %arg0, %c0_i32 : i32, i32
  }
}

</mosaic_0001>

<llo_original>
// kernel: textcnn_forward.1
$region0: #{textcnn_forward.1}
  #allocation0 [shape = 'u32[]', space=smem, size = 0x4, offset = 0x4, fixed_abs, tag = 'smem constant byte address 0x4 - core index']
  #allocation1 [shape = 'u32[144,128]{1,0:T(1,128)}', space=vmem, size = 0x12000, scoped, tag = 'internal scratch']
  %s0 = inlined_call_operand.vmem [shape: s32[512,1], index: 0, kind: input, shape index: {}]
  %s1 = inlined_call_operand.vmem [shape: bf16[128,6], index: 1, kind: input, shape index: {}]
  %s2 = inlined_call_operand.vmem [shape: bf16[128,6], index: 2, kind: input, shape index: {}]
  %s3 = inlined_call_operand.vmem [shape: f32[64,6], index: 3, kind: input, shape index: {}]
  %s4 = inlined_call_operand.vmem [shape: f32[6,128], index: 4, kind: input, shape index: {}]
  %s5 = inlined_call_operand.vmem [shape: f32[1,128], index: 5, kind: input, shape index: {}]
  %s6 = inlined_call_operand.vmem [shape: f32[8,128], index: 6, kind: output, shape index: {}]
  %s7 = sld [smem:[#allocation0]]
  $region34: #{textcnn_forward.1} parent=0
    _
  %s9 = ssub.s32 1, %s7
  %s10 = scalar_select 0, %s9, %s7
  // Predicated region
  $region2: #{textcnn_forward.1} parent=0 // pred_check
    _
  $region3: #{textcnn_forward.1} parent=0 // pred_check_branch
    %12 = sbr.rel (0) target = $region5
  $region4: #{textcnn_forward.1} parent=0 // pred_region
    _
  $region5: #{textcnn_forward.1} parent=0 // pred_fallthru
    _
  // Predicated region
  $region6: #{textcnn_forward.1} parent=0 // pred_check
    _
  $region7: #{textcnn_forward.1} parent=0 // pred_check_branch
    %14 = sbr.rel (0) target = $region9
  $region8: #{textcnn_forward.1} parent=0 // pred_region
    _
  $region9: #{textcnn_forward.1} parent=0 // pred_fallthru
    _
  // Predicated region
  $region10: #{textcnn_forward.1} parent=0 // pred_check
    _
  $region11: #{textcnn_forward.1} parent=0 // pred_check_branch
    %16 = sbr.rel (0) target = $region13
  $region12: #{textcnn_forward.1} parent=0 // pred_region
    _
  $region13: #{textcnn_forward.1} parent=0 // pred_fallthru
    _
  // Predicated region
  $region14: #{textcnn_forward.1} parent=0 // pred_check
    _
  $region15: #{textcnn_forward.1} parent=0 // pred_check_branch
    %18 = sbr.rel (0) target = $region17
  $region16: #{textcnn_forward.1} parent=0 // pred_region
    _
  $region17: #{textcnn_forward.1} parent=0 // pred_fallthru
    _
  // Predicated region
  $region18: #{textcnn_forward.1} parent=0 // pred_check
    _
  $region19: #{textcnn_forward.1} parent=0 // pred_check_branch
    %20 = sbr.rel (0) target = $region21
  $region20: #{textcnn_forward.1} parent=0 // pred_region
    _
  $region21: #{textcnn_forward.1} parent=0 // pred_fallthru
    _
  // Predicated region
  $region22: #{textcnn_forward.1} parent=0 // pred_check
    _
  $region23: #{textcnn_forward.1} parent=0 // pred_check_branch
    %22 = sbr.rel (0) target = $region25
  $region24: #{textcnn_forward.1} parent=0 // pred_region
    _
  $region25: #{textcnn_forward.1} parent=0 // pred_fallthru
    _
  %v24 = vlaneseq
  %v25 = vand.u32 %v24, 127
  %v26 = vld [vmem:[%s0] sm:$0xff]
  %v27 = vld [vmem:[%s0 + $0x8] sm:$0xff]
  %v28 = vld [vmem:[%s0 + $0x10] sm:$0xff]
  %v29 = vld [vmem:[%s0 + $0x18] sm:$0xff]
  %v30 = vld [vmem:[%s0 + $0x20] sm:$0xff]
  %v31 = vld [vmem:[%s0 + $0x28] sm:$0xff]
  %v32 = vld [vmem:[%s0 + $0x30] sm:$0xff]
  %v33 = vld [vmem:[%s0 + $0x38] sm:$0xff]
  %v34 = vld [vmem:[%s0 + $0x40] sm:$0xff]
  %v35 = vld [vmem:[%s0 + $0x48] sm:$0xff]
  %v36 = vld [vmem:[%s0 + $0x50] sm:$0xff]
  %v37 = vld [vmem:[%s0 + $0x58] sm:$0xff]
  %v38 = vld [vmem:[%s0 + $0x60] sm:$0xff]
  %v39 = vld [vmem:[%s0 + $0x68] sm:$0xff]
  %v40 = vld [vmem:[%s0 + $0x70] sm:$0xff]
  %v41 = vld [vmem:[%s0 + $0x78] sm:$0xff]
  %v42 = vld [vmem:[%s0 + $0x80] sm:$0xff]
  %v43 = vld [vmem:[%s0 + $0x88] sm:$0xff]
  %v44 = vld [vmem:[%s0 + $0x90] sm:$0xff]
  %v45 = vld [vmem:[%s0 + $0x98] sm:$0xff]
  %v46 = vld [vmem:[%s0 + $0xa0] sm:$0xff]
  %v47 = vld [vmem:[%s0 + $0xa8] sm:$0xff]
  %v48 = vld [vmem:[%s0 + $0xb0] sm:$0xff]
  %v49 = vld [vmem:[%s0 + $0xb8] sm:$0xff]
  %v50 = vld [vmem:[%s0 + $0xc0] sm:$0xff]
  %v51 = vld [vmem:[%s0 + $0xc8] sm:$0xff]
  %v52 = vld [vmem:[%s0 + $0xd0] sm:$0xff]
  %v53 = vld [vmem:[%s0 + $0xd8] sm:$0xff]
  %v54 = vld [vmem:[%s0 + $0xe0] sm:$0xff]
  %v55 = vld [vmem:[%s0 + $0xe8] sm:$0xff]
  %v56 = vld [vmem:[%s0 + $0xf0] sm:$0xff]
  %v57 = vld [vmem:[%s0 + $0xf8] sm:$0xff]
  %v58 = vld [vmem:[%s0 + $0x100] sm:$0xff]
  %v59 = vld [vmem:[%s0 + $0x108] sm:$0xff]
  %v60 = vld [vmem:[%s0 + $0x110] sm:$0xff]
  %v61 = vld [vmem:[%s0 + $0x118] sm:$0xff]
  %v62 = vld [vmem:[%s0 + $0x120] sm:$0xff]
  %v63 = vld [vmem:[%s0 + $0x128] sm:$0xff]
  %v64 = vld [vmem:[%s0 + $0x130] sm:$0xff]
  %v65 = vld [vmem:[%s0 + $0x138] sm:$0xff]
  %v66 = vld [vmem:[%s0 + $0x140] sm:$0xff]
  %v67 = vld [vmem:[%s0 + $0x148] sm:$0xff]
  %v68 = vld [vmem:[%s0 + $0x150] sm:$0xff]
  %v69 = vld [vmem:[%s0 + $0x158] sm:$0xff]
  %v70 = vld [vmem:[%s0 + $0x160] sm:$0xff]
  %v71 = vld [vmem:[%s0 + $0x168] sm:$0xff]
  %v72 = vld [vmem:[%s0 + $0x170] sm:$0xff]
  %v73 = vld [vmem:[%s0 + $0x178] sm:$0xff]
  %v74 = vld [vmem:[%s0 + $0x180] sm:$0xff]
  %v75 = vld [vmem:[%s0 + $0x188] sm:$0xff]
  %v76 = vld [vmem:[%s0 + $0x190] sm:$0xff]
  %v77 = vld [vmem:[%s0 + $0x198] sm:$0xff]
  %v78 = vld [vmem:[%s0 + $0x1a0] sm:$0xff]
  %v79 = vld [vmem:[%s0 + $0x1a8] sm:$0xff]
  %v80 = vld [vmem:[%s0 + $0x1b0] sm:$0xff]
  %v81 = vld [vmem:[%s0 + $0x1b8] sm:$0xff]
  %v82 = vld [vmem:[%s0 + $0x1c0] sm:$0xff]
  %v83 = vld [vmem:[%s0 + $0x1c8] sm:$0xff]
  %v84 = vld [vmem:[%s0 + $0x1d0] sm:$0xff]
  %v85 = vld [vmem:[%s0 + $0x1d8] sm:$0xff]
  %v86 = vld [vmem:[%s0 + $0x1e0] sm:$0xff]
  %v87 = vld [vmem:[%s0 + $0x1e8] sm:$0xff]
  %v88 = vld [vmem:[%s0 + $0x1f0] sm:$0xff]
  %v89 = vld [vmem:[%s0 + $0x1f8] sm:$0xff]
  %90 = vset.pattern.permute.xlu0 0
  %91 = vperm.xlu0 %90, %v26
  %v92 = vpop.permute.xlu0 %91
  %93 = vset.pattern.permute.xlu0 0
  %94 = vperm.xlu0 %93, %v27
  %v95 = vpop.permute.xlu0 %94
  %96 = vset.pattern.permute.xlu0 0
  %97 = vperm.xlu0 %96, %v28
  %v98 = vpop.permute.xlu0 %97
  %99 = vset.pattern.permute.xlu0 0
  %100 = vperm.xlu0 %99, %v29
  %v101 = vpop.permute.xlu0 %100
  %102 = vset.pattern.permute.xlu0 0
  %103 = vperm.xlu0 %102, %v30
  %v104 = vpop.permute.xlu0 %103
  %105 = vset.pattern.permute.xlu0 0
  %106 = vperm.xlu0 %105, %v31
  %v107 = vpop.permute.xlu0 %106
  %108 = vset.pattern.permute.xlu0 0
  %109 = vperm.xlu0 %108, %v32
  %v110 = vpop.permute.xlu0 %109
  %111 = vset.pattern.permute.xlu0 0
  %112 = vperm.xlu0 %111, %v33
  %v113 = vpop.permute.xlu0 %112
  %114 = vset.pattern.permute.xlu0 0
  %115 = vperm.xlu0 %114, %v34
  %v116 = vpop.permute.xlu0 %115
  %117 = vset.pattern.permute.xlu0 0
  %118 = vperm.xlu0 %117, %v35
  %v119 = vpop.permute.xlu0 %118
  %120 = vset.pattern.permute.xlu0 0
  %121 = vperm.xlu0 %120, %v36
  %v122 = vpop.permute.xlu0 %121
  %123 = vset.pattern.permute.xlu0 0
  %124 = vperm.xlu0 %123, %v37
  %v125 = vpop.permute.xlu0 %124
  %126 = vset.pattern.permute.xlu0 0
  %127 = vperm.xlu0 %126, %v38
  %v128 = vpop.permute.xlu0 %127
  %129 = vset.pattern.permute.xlu0 0
  %130 = vperm.xlu0 %129, %v39
  %v131 = vpop.permute.xlu0 %130
  %132 = vset.pattern.permute.xlu0 0
  %133 = vperm.xlu0 %132, %v40
  %v134 = vpop.permute.xlu0 %133
  %135 = vset.pattern.permute.xlu0 0
  %136 = vperm.xlu0 %135, %v41
  %v137 = vpop.permute.xlu0 %136
  %138 = vset.pattern.permute.xlu0 0
  %139 = vperm.xlu0 %138, %v42
  %v140 = vpop.permute.xlu0 %139
  %141 = vset.pattern.permute.xlu0 0
  %142 = vperm.xlu0 %141, %v43
  %v143 = vpop.permute.xlu0 %142
  %144 = vset.pattern.permute.xlu0 0
  %145 = vperm.xlu0 %144, %v44
  %v146 = vpop.permute.xlu0 %145
  %147 = vset.pattern.permute.xlu0 0
  %148 = vperm.xlu0 %147, %v45
  %v149 = vpop.permute.xlu0 %148
  %150 = vset.pattern.permute.xlu0 0
  %151 = vperm.xlu0 %150, %v46
  %v152 = vpop.permute.xlu0 %151
  %153 = vset.pattern.permute.xlu0 0
  %154 = vperm.xlu0 %153, %v47
  %v155 = vpop.permute.xlu0 %154
  %156 = vset.pattern.permute.xlu0 0
  %157 = vperm.xlu0 %156, %v48
  %v158 = vpop.permute.xlu0 %157
  %159 = vset.pattern.permute.xlu0 0
  %160 = vperm.xlu0 %159, %v49
  %v161 = vpop.permute.xlu0 %160
  %162 = vset.pattern.permute.xlu0 0
  %163 = vperm.xlu0 %162, %v50
  %v164 = vpop.permute.xlu0 %163
  %165 = vset.pattern.permute.xlu0 0
  %166 = vperm.xlu0 %165, %v51
  %v167 = vpop.permute.xlu0 %166
  %168 = vset.pattern.permute.xlu0 0
  %169 = vperm.xlu0 %168, %v52
  %v170 = vpop.permute.xlu0 %169
  %171 = vset.pattern.permute.xlu0 0
  %172 = vperm.xlu0 %171, %v53
  %v173 = vpop.permute.xlu0 %172
  %174 = vset.pattern.permute.xlu0 0
  %175 = vperm.xlu0 %174, %v54
  %v176 = vpop.permute.xlu0 %175
  %177 = vset.pattern.permute.xlu0 0
  %178 = vperm.xlu0 %177, %v55
  %v179 = vpop.permute.xlu0 %178
  %180 = vset.pattern.permute.xlu0 0
  %181 = vperm.xlu0 %180, %v56
  %v182 = vpop.permute.xlu0 %181
  %183 = vset.pattern.permute.xlu0 0
  %184 = vperm.xlu0 %183, %v57
  %v185 = vpop.permute.xlu0 %184
  %186 = vset.pattern.permute.xlu0 0
  %187 = vperm.xlu0 %186, %v58
  %v188 = vpop.permute.xlu0 %187
  %189 = vset.pattern.permute.xlu0 0
  %190 = vperm.xlu0 %189, %v59
  %v191 = vpop.permute.xlu0 %190
  %192 = vset.pattern.permute.xlu0 0
  %193 = vperm.xlu0 %192, %v60
  %v194 = vpop.permute.xlu0 %193
  %195 = vset.pattern.permute.xlu0 0
  %196 = vperm.xlu0 %195, %v61
  %v197 = vpop.permute.xlu0 %196
  %198 = vset.pattern.permute.xlu0 0
  %199 = vperm.xlu0 %198, %v62
  %v200 = vpop.permute.xlu0 %199
  %201 = vset.pattern.permute.xlu0 0
  %202 = vperm.xlu0 %201, %v63
  %v203 = vpop.permute.xlu0 %202
  %204 = vset.pattern.permute.xlu0 0
  %205 = vperm.xlu0 %204, %v64
  %v206 = vpop.permute.xlu0 %205
  %207 = vset.pattern.permute.xlu0 0
  %208 = vperm.xlu0 %207, %v65
  %v209 = vpop.permute.xlu0 %208
  %210 = vset.pattern.permute.xlu0 0
  %211 = vperm.xlu0 %210, %v66
  %v212 = vpop.permute.xlu0 %211
  %213 = vset.pattern.permute.xlu0 0
  %214 = vperm.xlu0 %213, %v67
  %v215 = vpop.permute.xlu0 %214
  %216 = vset.pattern.permute.xlu0 0
  %217 = vperm.xlu0 %216, %v68
  %v218 = vpop.permute.xlu0 %217
  %219 = vset.pattern.permute.xlu0 0
  %220 = vperm.xlu0 %219, %v69
  %v221 = vpop.permute.xlu0 %220
  %222 = vset.pattern.permute.xlu0 0
  %223 = vperm.xlu0 %222, %v70
  %v224 = vpop.permute.xlu0 %223
  %225 = vset.pattern.permute.xlu0 0
  %226 = vperm.xlu0 %225, %v71
  %v227 = vpop.permute.xlu0 %226
  %228 = vset.pattern.permute.xlu0 0
  %229 = vperm.xlu0 %228, %v72
  %v230 = vpop.permute.xlu0 %229
  %231 = vset.pattern.permute.xlu0 0
  %232 = vperm.xlu0 %231, %v73
  %v233 = vpop.permute.xlu0 %232
  %234 = vset.pattern.permute.xlu0 0
  %235 = vperm.xlu0 %234, %v74
  %v236 = vpop.permute.xlu0 %235
  %237 = vset.pattern.permute.xlu0 0
  %238 = vperm.xlu0 %237, %v75
  %v239 = vpop.permute.xlu0 %238
  %240 = vset.pattern.permute.xlu0 0
  %241 = vperm.xlu0 %240, %v76
  %v242 = vpop.permute.xlu0 %241
  %243 = vset.pattern.permute.xlu0 0
  %244 = vperm.xlu0 %243, %v77
  %v245 = vpop.permute.xlu0 %244
  %246 = vset.pattern.permute.xlu0 0
  %247 = vperm.xlu0 %246, %v78
  %v248 = vpop.permute.xlu0 %247
  %249 = vset.pattern.permute.xlu0 0
  %250 = vperm.xlu0 %249, %v79
  %v251 = vpop.permute.xlu0 %250
  %252 = vset.pattern.permute.xlu0 0
  %253 = vperm.xlu0 %252, %v80
  %v254 = vpop.permute.xlu0 %253
  %255 = vset.pattern.permute.xlu0 0
  %256 = vperm.xlu0 %255, %v81
  %v257 = vpop.permute.xlu0 %256
  %258 = vset.pattern.permute.xlu0 0
  %259 = vperm.xlu0 %258, %v82
  %v260 = vpop.permute.xlu0 %259
  %261 = vset.pattern.permute.xlu0 0
  %262 = vperm.xlu0 %261, %v83
  %v263 = vpop.permute.xlu0 %262
  %264 = vset.pattern.permute.xlu0 0
  %265 = vperm.xlu0 %264, %v84
  %v266 = vpop.permute.xlu0 %265
  %267 = vset.pattern.permute.xlu0 0
  %268 = vperm.xlu0 %267, %v85
  %v269 = vpop.permute.xlu0 %268
  %270 = vset.pattern.permute.xlu0 0
  %271 = vperm.xlu0 %270, %v86
  %v272 = vpop.permute.xlu0 %271
  %273 = vset.pattern.permute.xlu0 0
  %274 = vperm.xlu0 %273, %v87
  %v275 = vpop.permute.xlu0 %274
  %276 = vset.pattern.permute.xlu0 0
  %277 = vperm.xlu0 %276, %v88
  %v278 = vpop.permute.xlu0 %277
  %279 = vset.pattern.permute.xlu0 0
  %280 = vperm.xlu0 %279, %v89
  %v281 = vpop.permute.xlu0 %280
  %vm282 = vcmp.eq.s32.totalorder %v25, %v92
  %vm283 = vcmp.eq.s32.totalorder %v25, %v95
  %vm284 = vcmp.eq.s32.totalorder %v25, %v98
  %vm285 = vcmp.eq.s32.totalorder %v25, %v101
  %vm286 = vcmp.eq.s32.totalorder %v25, %v104
  %vm287 = vcmp.eq.s32.totalorder %v25, %v107
  %vm288 = vcmp.eq.s32.totalorder %v25, %v110
  %vm289 = vcmp.eq.s32.totalorder %v25, %v113
  %vm290 = vcmp.eq.s32.totalorder %v25, %v116
  %vm291 = vcmp.eq.s32.totalorder %v25, %v119
  %vm292 = vcmp.eq.s32.totalorder %v25, %v122
  %vm293 = vcmp.eq.s32.totalorder %v25, %v125
  %vm294 = vcmp.eq.s32.totalorder %v25, %v128
  %vm295 = vcmp.eq.s32.totalorder %v25, %v131
  %vm296 = vcmp.eq.s32.totalorder %v25, %v134
  %vm297 = vcmp.eq.s32.totalorder %v25, %v137
  %vm298 = vcmp.eq.s32.totalorder %v25, %v140
  %vm299 = vcmp.eq.s32.totalorder %v25, %v143
  %vm300 = vcmp.eq.s32.totalorder %v25, %v146
  %vm301 = vcmp.eq.s32.totalorder %v25, %v149
  %vm302 = vcmp.eq.s32.totalorder %v25, %v152
  %vm303 = vcmp.eq.s32.totalorder %v25, %v155
  %vm304 = vcmp.eq.s32.totalorder %v25, %v158
  %vm305 = vcmp.eq.s32.totalorder %v25, %v161
  %vm306 = vcmp.eq.s32.totalorder %v25, %v164
  %vm307 = vcmp.eq.s32.totalorder %v25, %v167
  %vm308 = vcmp.eq.s32.totalorder %v25, %v170
  %vm309 = vcmp.eq.s32.totalorder %v25, %v173
  %vm310 = vcmp.eq.s32.totalorder %v25, %v176
  %vm311 = vcmp.eq.s32.totalorder %v25, %v179
  %vm312 = vcmp.eq.s32.totalorder %v25, %v182
  %vm313 = vcmp.eq.s32.totalorder %v25, %v185
  %vm314 = vcmp.eq.s32.totalorder %v25, %v188
  %vm315 = vcmp.eq.s32.totalorder %v25, %v191
  %vm316 = vcmp.eq.s32.totalorder %v25, %v194
  %vm317 = vcmp.eq.s32.totalorder %v25, %v197
  %vm318 = vcmp.eq.s32.totalorder %v25, %v200
  %vm319 = vcmp.eq.s32.totalorder %v25, %v203
  %vm320 = vcmp.eq.s32.totalorder %v25, %v206
  %vm321 = vcmp.eq.s32.totalorder %v25, %v209
  %vm322 = vcmp.eq.s32.totalorder %v25, %v212
  %vm323 = vcmp.eq.s32.totalorder %v25, %v215
  %vm324 = vcmp.eq.s32.totalorder %v25, %v218
  %vm325 = vcmp.eq.s32.totalorder %v25, %v221
  %vm326 = vcmp.eq.s32.totalorder %v25, %v224
  %vm327 = vcmp.eq.s32.totalorder %v25, %v227
  %vm328 = vcmp.eq.s32.totalorder %v25, %v230
  %vm329 = vcmp.eq.s32.totalorder %v25, %v233
  %vm330 = vcmp.eq.s32.totalorder %v25, %v236
  %vm331 = vcmp.eq.s32.totalorder %v25, %v239
  %vm332 = vcmp.eq.s32.totalorder %v25, %v242
  %vm333 = vcmp.eq.s32.totalorder %v25, %v245
  %vm334 = vcmp.eq.s32.totalorder %v25, %v248
  %vm335 = vcmp.eq.s32.totalorder %v25, %v251
  %vm336 = vcmp.eq.s32.totalorder %v25, %v254
  %vm337 = vcmp.eq.s32.totalorder %v25, %v257
  %vm338 = vcmp.eq.s32.totalorder %v25, %v260
  %vm339 = vcmp.eq.s32.totalorder %v25, %v263
  %vm340 = vcmp.eq.s32.totalorder %v25, %v266
  %vm341 = vcmp.eq.s32.totalorder %v25, %v269
  %vm342 = vcmp.eq.s32.totalorder %v25, %v272
  %vm343 = vcmp.eq.s32.totalorder %v25, %v275
  %vm344 = vcmp.eq.s32.totalorder %v25, %v278
  %vm345 = vcmp.eq.s32.totalorder %v25, %v281
  %v346 = vsel %vm282, 1, 0
  %v347 = vsel %vm283, 1, 0
  %v348 = vsel %vm284, 1, 0
  %v349 = vsel %vm285, 1, 0
  %v350 = vsel %vm286, 1, 0
  %v351 = vsel %vm287, 1, 0
  %v352 = vsel %vm288, 1, 0
  %v353 = vsel %vm289, 1, 0
  %v354 = vsel %vm290, 1, 0
  %v355 = vsel %vm291, 1, 0
  %v356 = vsel %vm292, 1, 0
  %v357 = vsel %vm293, 1, 0
  %v358 = vsel %vm294, 1, 0
  %v359 = vsel %vm295, 1, 0
  %v360 = vsel %vm296, 1, 0
  %v361 = vsel %vm297, 1, 0
  %v362 = vsel %vm298, 1, 0
  %v363 = vsel %vm299, 1, 0
  %v364 = vsel %vm300, 1, 0
  %v365 = vsel %vm301, 1, 0
  %v366 = vsel %vm302, 1, 0
  %v367 = vsel %vm303, 1, 0
  %v368 = vsel %vm304, 1, 0
  %v369 = vsel %vm305, 1, 0
  %v370 = vsel %vm306, 1, 0
  %v371 = vsel %vm307, 1, 0
  %v372 = vsel %vm308, 1, 0
  %v373 = vsel %vm309, 1, 0
  %v374 = vsel %vm310, 1, 0
  %v375 = vsel %vm311, 1, 0
  %v376 = vsel %vm312, 1, 0
  %v377 = vsel %vm313, 1, 0
  %v378 = vsel %vm314, 1, 0
  %v379 = vsel %vm315, 1, 0
  %v380 = vsel %vm316, 1, 0
  %v381 = vsel %vm317, 1, 0
  %v382 = vsel %vm318, 1, 0
  %v383 = vsel %vm319, 1, 0
  %v384 = vsel %vm320, 1, 0
  %v385 = vsel %vm321, 1, 0
  %v386 = vsel %vm322, 1, 0
  %v387 = vsel %vm323, 1, 0
  %v388 = vsel %vm324, 1, 0
  %v389 = vsel %vm325, 1, 0
  %v390 = vsel %vm326, 1, 0
  %v391 = vsel %vm327, 1, 0
  %v392 = vsel %vm328, 1, 0
  %v393 = vsel %vm329, 1, 0
  %v394 = vsel %vm330, 1, 0
  %v395 = vsel %vm331, 1, 0
  %v396 = vsel %vm332, 1, 0
  %v397 = vsel %vm333, 1, 0
  %v398 = vsel %vm334, 1, 0
  %v399 = vsel %vm335, 1, 0
  %v400 = vsel %vm336, 1, 0
  %v401 = vsel %vm337, 1, 0
  %v402 = vsel %vm338, 1, 0
  %v403 = vsel %vm339, 1, 0
  %v404 = vsel %vm340, 1, 0
  %v405 = vsel %vm341, 1, 0
  %v406 = vsel %vm342, 1, 0
  %v407 = vsel %vm343, 1, 0
  %v408 = vsel %vm344, 1, 0
  %v409 = vsel %vm345, 1, 0
  %v410 = vcvt.s32.f32 %v346
  %v411 = vcvt.s32.f32 %v347
  %v412 = vcvt.s32.f32 %v348
  %v413 = vcvt.s32.f32 %v349
  %v414 = vcvt.s32.f32 %v350
  %v415 = vcvt.s32.f32 %v351
  %v416 = vcvt.s32.f32 %v352
  %v417 = vcvt.s32.f32 %v353
  %v418 = vcvt.s32.f32 %v354
  %v419 = vcvt.s32.f32 %v355
  %v420 = vcvt.s32.f32 %v356
  %v421 = vcvt.s32.f32 %v357
  %v422 = vcvt.s32.f32 %v358
  %v423 = vcvt.s32.f32 %v359
  %v424 = vcvt.s32.f32 %v360
  %v425 = vcvt.s32.f32 %v361
  %v426 = vcvt.s32.f32 %v362
  %v427 = vcvt.s32.f32 %v363
  %v428 = vcvt.s32.f32 %v364
  %v429 = vcvt.s32.f32 %v365
  %v430 = vcvt.s32.f32 %v366
  %v431 = vcvt.s32.f32 %v367
  %v432 = vcvt.s32.f32 %v368
  %v433 = vcvt.s32.f32 %v369
  %v434 = vcvt.s32.f32 %v370
  %v435 = vcvt.s32.f32 %v371
  %v436 = vcvt.s32.f32 %v372
  %v437 = vcvt.s32.f32 %v373
  %v438 = vcvt.s32.f32 %v374
  %v439 = vcvt.s32.f32 %v375
  %v440 = vcvt.s32.f32 %v376
  %v441 = vcvt.s32.f32 %v377
  %v442 = vcvt.s32.f32 %v378
  %v443 = vcvt.s32.f32 %v379
  %v444 = vcvt.s32.f32 %v380
  %v445 = vcvt.s32.f32 %v381
  %v446 = vcvt.s32.f32 %v382
  %v447 = vcvt.s32.f32 %v383
  %v448 = vcvt.s32.f32 %v384
  %v449 = vcvt.s32.f32 %v385
  %v450 = vcvt.s32.f32 %v386
  %v451 = vcvt.s32.f32 %v387
  %v452 = vcvt.s32.f32 %v388
  %v453 = vcvt.s32.f32 %v389
  %v454 = vcvt.s32.f32 %v390
  %v455 = vcvt.s32.f32 %v391
  %v456 = vcvt.s32.f32 %v392
  %v457 = vcvt.s32.f32 %v393
  %v458 = vcvt.s32.f32 %v394
  %v459 = vcvt.s32.f32 %v395
  %v460 = vcvt.s32.f32 %v396
  %v461 = vcvt.s32.f32 %v397
  %v462 = vcvt.s32.f32 %v398
  %v463 = vcvt.s32.f32 %v399
  %v464 = vcvt.s32.f32 %v400
  %v465 = vcvt.s32.f32 %v401
  %v466 = vcvt.s32.f32 %v402
  %v467 = vcvt.s32.f32 %v403
  %v468 = vcvt.s32.f32 %v404
  %v469 = vcvt.s32.f32 %v405
  %v470 = vcvt.s32.f32 %v406
  %v471 = vcvt.s32.f32 %v407
  %v472 = vcvt.s32.f32 %v408
  %v473 = vcvt.s32.f32 %v409
  %v474 = vpack.c.bf16 %v411, %v410
  %v475 = vpack.c.bf16 %v413, %v412
  %v476 = vpack.c.bf16 %v415, %v414
  %v477 = vpack.c.bf16 %v417, %v416
  %v478 = vpack.c.bf16 %v419, %v418
  %v479 = vpack.c.bf16 %v421, %v420
  %v480 = vpack.c.bf16 %v423, %v422
  %v481 = vpack.c.bf16 %v425, %v424
  %v482 = vpack.c.bf16 %v427, %v426
  %v483 = vpack.c.bf16 %v429, %v428
  %v484 = vpack.c.bf16 %v431, %v430
  %v485 = vpack.c.bf16 %v433, %v432
  %v486 = vpack.c.bf16 %v435, %v434
  %v487 = vpack.c.bf16 %v437, %v436
  %v488 = vpack.c.bf16 %v439, %v438
  %v489 = vpack.c.bf16 %v441, %v440
  %v490 = vpack.c.bf16 %v443, %v442
  %v491 = vpack.c.bf16 %v445, %v444
  %v492 = vpack.c.bf16 %v447, %v446
  %v493 = vpack.c.bf16 %v449, %v448
  %v494 = vpack.c.bf16 %v451, %v450
  %v495 = vpack.c.bf16 %v453, %v452
  %v496 = vpack.c.bf16 %v455, %v454
  %v497 = vpack.c.bf16 %v457, %v456
  %v498 = vpack.c.bf16 %v459, %v458
  %v499 = vpack.c.bf16 %v461, %v460
  %v500 = vpack.c.bf16 %v463, %v462
  %v501 = vpack.c.bf16 %v465, %v464
  %v502 = vpack.c.bf16 %v467, %v466
  %v503 = vpack.c.bf16 %v469, %v468
  %v504 = vpack.c.bf16 %v471, %v470
  %v505 = vpack.c.bf16 %v473, %v472
  %v506 = vld [vmem:[%s1] sm:$0xf]
  %v507 = vld [vmem:[%s1 + $0x4] sm:$0xf]
  %v508 = vld [vmem:[%s1 + $0x8] sm:$0xf]
  %v509 = vld [vmem:[%s1 + $0xc] sm:$0xf]
  %v510 = vld [vmem:[%s1 + $0x10] sm:$0xf]
  %v511 = vld [vmem:[%s1 + $0x14] sm:$0xf]
  %v512 = vld [vmem:[%s1 + $0x18] sm:$0xf]
  %v513 = vld [vmem:[%s1 + $0x1c] sm:$0xf]
  %v514 = vld [vmem:[%s1 + $0x20] sm:$0xf]
  %v515 = vld [vmem:[%s1 + $0x24] sm:$0xf]
  %v516 = vld [vmem:[%s1 + $0x28] sm:$0xf]
  %v517 = vld [vmem:[%s1 + $0x2c] sm:$0xf]
  %v518 = vld [vmem:[%s1 + $0x30] sm:$0xf]
  %v519 = vld [vmem:[%s1 + $0x34] sm:$0xf]
  %v520 = vld [vmem:[%s1 + $0x38] sm:$0xf]
  %v521 = vld [vmem:[%s1 + $0x3c] sm:$0xf]
  %v522 = vld [vmem:[%s2] sm:$0xf]
  %v523 = vld [vmem:[%s2 + $0x4] sm:$0xf]
  %v524 = vld [vmem:[%s2 + $0x8] sm:$0xf]
  %v525 = vld [vmem:[%s2 + $0xc] sm:$0xf]
  %v526 = vld [vmem:[%s2 + $0x10] sm:$0xf]
  %v527 = vld [vmem:[%s2 + $0x14] sm:$0xf]
  %v528 = vld [vmem:[%s2 + $0x18] sm:$0xf]
  %v529 = vld [vmem:[%s2 + $0x1c] sm:$0xf]
  %v530 = vld [vmem:[%s2 + $0x20] sm:$0xf]
  %v531 = vld [vmem:[%s2 + $0x24] sm:$0xf]
  %v532 = vld [vmem:[%s2 + $0x28] sm:$0xf]
  %v533 = vld [vmem:[%s2 + $0x2c] sm:$0xf]
  %v534 = vld [vmem:[%s2 + $0x30] sm:$0xf]
  %v535 = vld [vmem:[%s2 + $0x34] sm:$0xf]
  %v536 = vld [vmem:[%s2 + $0x38] sm:$0xf]
  %v537 = vld [vmem:[%s2 + $0x3c] sm:$0xf]
  %v554 = vunpack.c.l.b16 %v522
  %v555 = vunpack.c.l.b16 %v523
  %v556 = vunpack.c.l.b16 %v524
  %v557 = vunpack.c.l.b16 %v525
  %v558 = vunpack.c.l.b16 %v526
  %v559 = vunpack.c.l.b16 %v527
  %v560 = vunpack.c.l.b16 %v528
  %v561 = vunpack.c.l.b16 %v529
  %v562 = vunpack.c.l.b16 %v530
  %v563 = vunpack.c.l.b16 %v531
  %v564 = vunpack.c.l.b16 %v532
  %v565 = vunpack.c.l.b16 %v533
  %v566 = vunpack.c.l.b16 %v534
  %v567 = vunpack.c.l.b16 %v535
  %v568 = vunpack.c.l.b16 %v536
  %v569 = vunpack.c.l.b16 %v537
  %v570 = vpack.c.b16 %v555, %v554
  %v571 = vpack.c.b16 %v557, %v556
  %v572 = vpack.c.b16 %v559, %v558
  %v573 = vpack.c.b16 %v561, %v560
  %v574 = vpack.c.b16 %v563, %v562
  %v575 = vpack.c.b16 %v565, %v564
  %v576 = vpack.c.b16 %v567, %v566
  %v577 = vpack.c.b16 %v569, %v568
  %586 = vmatprep.subr.bf16.mxu0 0
  %587 = vmatpush1.bf16.msra.mxu0 %v570
  %588 = vmatprep.subr.bf16.mxu0 0
  %589 = vmatpush1.bf16.msra.mxu0 %v571
  %590 = vmatprep.subr.bf16.mxu0 0
  %591 = vmatpush1.bf16.msra.mxu0 %v572
  %592 = vmatprep.subr.bf16.mxu0 0
  %593 = vmatpush1.bf16.msra.mxu0 %v573
  %594 = vmatprep.subr.bf16.mxu0 0
  %595 = vmatpush1.bf16.msra.mxu0 %v574
  %596 = vmatprep.subr.bf16.mxu0 0
  %597 = vmatpush1.bf16.msra.mxu0 %v575
  %598 = vmatprep.subr.bf16.mxu0 0
  %599 = vmatpush1.bf16.msra.mxu0 %v576
  %600 = vmatprep.subr.bf16.mxu0 0
  %601 = vmatpush1.bf16.msra.mxu0 %v577
  %602 = vmatprep.subr.bf16.mxu0 0
  %603 = vmatpush1.bf16.msra.mxu0 0
  %604 = vmatprep.subr.bf16.mxu0 0
  %605 = vmatpush1.bf16.msra.mxu0 0
  %606 = vmatprep.subr.bf16.mxu0 0
  %607 = vmatpush1.bf16.msra.mxu0 0
  %608 = vmatprep.subr.bf16.mxu0 0
  %609 = vmatpush1.bf16.msra.mxu0 0
  %610 = vmatprep.subr.bf16.mxu0 0
  %611 = vmatpush1.bf16.msra.mxu0 0
  %612 = vmatprep.subr.bf16.mxu0 0
  %613 = vmatpush1.bf16.msra.mxu0 0
  %614 = vmatprep.subr.bf16.mxu0 0
  %615 = vmatpush1.bf16.msra.mxu0 0
  %616 = vmatprep.subr.bf16.mxu0 0
  %617 = vmatpush1.bf16.msra.mxu0 0
  %618 = vmatprep.mubr.bf16.mxu0 0
  %619 = vmatmul.mubr.bf16.gmra.mrb[0].mxu0 %v474
  %v620 = vpop.f32.mrb[0].mxu0
  %v621 = vadd.f32 0.0, %v620
  %v622 = vpop.f32.mrb[0].mxu0
  %v623 = vpop.f32.mrb[0].mxu0
  %v624 = vadd.f32 0.0, %v623
  %v625 = vpop.f32.mrb[0].mxu0
  %626 = vmatprep.mubr.bf16.mxu0 0
  %627 = vmatmul.mubr.bf16.gmra.mrb[0].mxu0 %v475
  %v628 = vpop.f32.mrb[0].mxu0
  %v629 = vadd.f32 0.0, %v628
  %v630 = vpop.f32.mrb[0].mxu0
  %v631 = vpop.f32.mrb[0].mxu0
  %v632 = vadd.f32 0.0, %v631
  %v633 = vpop.f32.mrb[0].mxu0
  %634 = vmatprep.mubr.bf16.mxu0 0
  %635 = vmatmul.mubr.bf16.gmra.mrb[0].mxu0 %v476
  %v636 = vpop.f32.mrb[0].mxu0
  %v637 = vadd.f32 0.0, %v636
  %v638 = vpop.f32.mrb[0].mxu0
  %v639 = vpop.f32.mrb[0].mxu0
  %v640 = vadd.f32 0.0, %v639
  %v641 = vpop.f32.mrb[0].mxu0
  %642 = vmatprep.mubr.bf16.mxu0 0
  %643 = vmatmul.mubr.bf16.gmra.mrb[0].mxu0 %v477
  %v644 = vpop.f32.mrb[0].mxu0
  %v645 = vadd.f32 0.0, %v644
  %v646 = vpop.f32.mrb[0].mxu0
  %v647 = vpop.f32.mrb[0].mxu0
  %v648 = vadd.f32 0.0, %v647
  %v649 = vpop.f32.mrb[0].mxu0
  %650 = vmatprep.mubr.bf16.mxu0 0
  %651 = vmatmul.mubr.bf16.gmra.mrb[0].mxu0 %v478
  %v652 = vpop.f32.mrb[0].mxu0
  %v653 = vadd.f32 0.0, %v652
  %v654 = vpop.f32.mrb[0].mxu0
  %v655 = vpop.f32.mrb[0].mxu0
  %v656 = vadd.f32 0.0, %v655
  %v657 = vpop.f32.mrb[0].mxu0
  %658 = vmatprep.mubr.bf16.mxu0 0
  %659 = vmatmul.mubr.bf16.gmra.mrb[0].mxu0 %v479
  %v660 = vpop.f32.mrb[0].mxu0
  %v661 = vadd.f32 0.0, %v660
  %v662 = vpop.f32.mrb[0].mxu0
  %v663 = vpop.f32.mrb[0].mxu0
  %v664 = vadd.f32 0.0, %v663
  %v665 = vpop.f32.mrb[0].mxu0
  %666 = vmatprep.mubr.bf16.mxu0 0
  %667 = vmatmul.mubr.bf16.gmra.mrb[0].mxu0 %v480
  %v668 = vpop.f32.mrb[0].mxu0
  %v669 = vadd.f32 0.0, %v668
  %v670 = vpop.f32.mrb[0].mxu0
  %v671 = vpop.f32.mrb[0].mxu0
  %v672 = vadd.f32 0.0, %v671
  %v673 = vpop.f32.mrb[0].mxu0
  %674 = vmatprep.mubr.bf16.mxu0 0
  %675 = vmatmul.mubr.bf16.gmra.mrb[0].mxu0 %v481
  %v676 = vpop.f32.mrb[0].mxu0
  %v677 = vadd.f32 0.0, %v676
  %v678 = vpop.f32.mrb[0].mxu0
  %v679 = vpop.f32.mrb[0].mxu0
  %v680 = vadd.f32 0.0, %v679
  %v681 = vpop.f32.mrb[0].mxu0
  %682 = vmatprep.mubr.bf16.mxu0 0
  %683 = vmatmul.mubr.bf16.gmra.mrb[0].mxu0 %v482
  %v684 = vpop.f32.mrb[0].mxu0
  %v685 = vadd.f32 0.0, %v684
  %v686 = vpop.f32.mrb[0].mxu0
  %v687 = vpop.f32.mrb[0].mxu0
  %v688 = vadd.f32 0.0, %v687
  %v689 = vpop.f32.mrb[0].mxu0
  %690 = vmatprep.mubr.bf16.mxu0 0
  %691 = vmatmul.mubr.bf16.gmra.mrb[0].mxu0 %v483
  %v692 = vpop.f32.mrb[0].mxu0
  %v693 = vadd.f32 0.0, %v692
  %v694 = vpop.f32.mrb[0].mxu0
  %v695 = vpop.f32.mrb[0].mxu0
  %v696 = vadd.f32 0.0, %v695
  %v697 = vpop.f32.mrb[0].mxu0
  %698 = vmatprep.mubr.bf16.mxu0 0
  %699 = vmatmul.mubr.bf16.gmra.mrb[0].mxu0 %v484
  %v700 = vpop.f32.mrb[0].mxu0
  %v701 = vadd.f32 0.0, %v700
  %v702 = vpop.f32.mrb[0].mxu0
  %v703 = vpop.f32.mrb[0].mxu0
  %v704 = vadd.f32 0.0, %v703
  %v705 = vpop.f32.mrb[0].mxu0
  %706 = vmatprep.mubr.bf16.mxu0 0
  %707 = vmatmul.mubr.bf16.gmra.mrb[0].mxu0 %v485
  %v708 = vpop.f32.mrb[0].mxu0
  %v709 = vadd.f32 0.0, %v708
  %v710 = vpop.f32.mrb[0].mxu0
  %v711 = vpop.f32.mrb[0].mxu0
  %v712 = vadd.f32 0.0, %v711
  %v713 = vpop.f32.mrb[0].mxu0
  %714 = vmatprep.mubr.bf16.mxu0 0
  %715 = vmatmul.mubr.bf16.gmra.mrb[0].mxu0 %v486
  %v716 = vpop.f32.mrb[0].mxu0
  %v717 = vadd.f32 0.0, %v716
  %v718 = vpop.f32.mrb[0].mxu0
  %v719 = vpop.f32.mrb[0].mxu0
  %v720 = vadd.f32 0.0, %v719
  %v721 = vpop.f32.mrb[0].mxu0
  %722 = vmatprep.mubr.bf16.mxu0 0
  %723 = vmatmul.mubr.bf16.gmra.mrb[0].mxu0 %v487
  %v724 = vpop.f32.mrb[0].mxu0
  %v725 = vadd.f32 0.0, %v724
  %v726 = vpop.f32.mrb[0].mxu0
  %v727 = vpop.f32.mrb[0].mxu0
  %v728 = vadd.f32 0.0, %v727
  %v729 = vpop.f32.mrb[0].mxu0
  %730 = vmatprep.mubr.bf16.mxu0 0
  %731 = vmatmul.mubr.bf16.gmra.mrb[0].mxu0 %v488
  %v732 = vpop.f32.mrb[0].mxu0
  %v733 = vadd.f32 0.0, %v732
  %v734 = vpop.f32.mrb[0].mxu0
  %v735 = vpop.f32.mrb[0].mxu0
  %v736 = vadd.f32 0.0, %v735
  %v737 = vpop.f32.mrb[0].mxu0
  %738 = vmatprep.mubr.bf16.mxu0 0
  %739 = vmatmul.mubr.bf16.gmra.mrb[0].mxu0 %v489
  %v740 = vpop.f32.mrb[0].mxu0
  %v741 = vadd.f32 0.0, %v740
  %v742 = vpop.f32.mrb[0].mxu0
  %v743 = vpop.f32.mrb[0].mxu0
  %v744 = vadd.f32 0.0, %v743
  %v745 = vpop.f32.mrb[0].mxu0
  %746 = vmatprep.mubr.bf16.mxu0 0
  %747 = vmatmul.mubr.bf16.gmra.mrb[0].mxu0 %v490
  %v748 = vpop.f32.mrb[0].mxu0
  %v749 = vadd.f32 0.0, %v748
  %v750 = vpop.f32.mrb[0].mxu0
  %v751 = vpop.f32.mrb[0].mxu0
  %v752 = vadd.f32 0.0, %v751
  %v753 = vpop.f32.mrb[0].mxu0
  %754 = vmatprep.mubr.bf16.mxu0 0
  %755 = vmatmul.mubr.bf16.gmra.mrb[0].mxu0 %v491
  %v756 = vpop.f32.mrb[0].mxu0
  %v757 = vadd.f32 0.0, %v756
  %v758 = vpop.f32.mrb[0].mxu0
  %v759 = vpop.f32.mrb[0].mxu0
  %v760 = vadd.f32 0.0, %v759
  %v761 = vpop.f32.mrb[0].mxu0
  %762 = vmatprep.mubr.bf16.mxu0 0
  %763 = vmatmul.mubr.bf16.gmra.mrb[0].mxu0 %v492
  %v764 = vpop.f32.mrb[0].mxu0
  %v765 = vadd.f32 0.0, %v764
  %v766 = vpop.f32.mrb[0].mxu0
  %v767 = vpop.f32.mrb[0].mxu0
  %v768 = vadd.f32 0.0, %v767
  %v769 = vpop.f32.mrb[0].mxu0
  %770 = vmatprep.mubr.bf16.mxu0 0
  %771 = vmatmul.mubr.bf16.gmra.mrb[0].mxu0 %v493
  %v772 = vpop.f32.mrb[0].mxu0
  %v773 = vadd.f32 0.0, %v772
  %v774 = vpop.f32.mrb[0].mxu0
  %v775 = vpop.f32.mrb[0].mxu0
  %v776 = vadd.f32 0.0, %v775
  %v777 = vpop.f32.mrb[0].mxu0
  %778 = vmatprep.mubr.bf16.mxu0 0
  %779 = vmatmul.mubr.bf16.gmra.mrb[0].mxu0 %v494
  %v780 = vpop.f32.mrb[0].mxu0
  %v781 = vadd.f32 0.0, %v780
  %v782 = vpop.f32.mrb[0].mxu0
  %v783 = vpop.f32.mrb[0].mxu0
  %v784 = vadd.f32 0.0, %v783
  %v785 = vpop.f32.mrb[0].mxu0
  %786 = vmatprep.mubr.bf16.mxu0 0
  %787 = vmatmul.mubr.bf16.gmra.mrb[0].mxu0 %v495
  %v788 = vpop.f32.mrb[0].mxu0
  %v789 = vadd.f32 0.0, %v788
  %v790 = vpop.f32.mrb[0].mxu0
  %v791 = vpop.f32.mrb[0].mxu0
  %v792 = vadd.f32 0.0, %v791
  %v793 = vpop.f32.mrb[0].mxu0
  %794 = vmatprep.mubr.bf16.mxu0 0
  %795 = vmatmul.mubr.bf16.gmra.mrb[0].mxu0 %v496
  %v796 = vpop.f32.mrb[0].mxu0
  %v797 = vadd.f32 0.0, %v796
  %v798 = vpop.f32.mrb[0].mxu0
  %v799 = vpop.f32.mrb[0].mxu0
  %v800 = vadd.f32 0.0, %v799
  %v801 = vpop.f32.mrb[0].mxu0
  %802 = vmatprep.mubr.bf16.mxu0 0
  %803 = vmatmul.mubr.bf16.gmra.mrb[0].mxu0 %v497
  %v804 = vpop.f32.mrb[0].mxu0
  %v805 = vadd.f32 0.0, %v804
  %v806 = vpop.f32.mrb[0].mxu0
  %v807 = vpop.f32.mrb[0].mxu0
  %v808 = vadd.f32 0.0, %v807
  %v809 = vpop.f32.mrb[0].mxu0
  %810 = vmatprep.mubr.bf16.mxu0 0
  %811 = vmatmul.mubr.bf16.gmra.mrb[0].mxu0 %v498
  %v812 = vpop.f32.mrb[0].mxu0
  %v813 = vadd.f32 0.0, %v812
  %v814 = vpop.f32.mrb[0].mxu0
  %v815 = vpop.f32.mrb[0].mxu0
  %v816 = vadd.f32 0.0, %v815
  %v817 = vpop.f32.mrb[0].mxu0
  %818 = vmatprep.mubr.bf16.mxu0 0
  %819 = vmatmul.mubr.bf16.gmra.mrb[0].mxu0 %v499
  %v820 = vpop.f32.mrb[0].mxu0
  %v821 = vadd.f32 0.0, %v820
  %v822 = vpop.f32.mrb[0].mxu0
  %v823 = vpop.f32.mrb[0].mxu0
  %v824 = vadd.f32 0.0, %v823
  %v825 = vpop.f32.mrb[0].mxu0
  %826 = vmatprep.mubr.bf16.mxu0 0
  %827 = vmatmul.mubr.bf16.gmra.mrb[0].mxu0 %v500
  %v828 = vpop.f32.mrb[0].mxu0
  %v829 = vadd.f32 0.0, %v828
  %v830 = vpop.f32.mrb[0].mxu0
  %v831 = vpop.f32.mrb[0].mxu0
  %v832 = vadd.f32 0.0, %v831
  %v833 = vpop.f32.mrb[0].mxu0
  %834 = vmatprep.mubr.bf16.mxu0 0
  %835 = vmatmul.mubr.bf16.gmra.mrb[0].mxu0 %v501
  %v836 = vpop.f32.mrb[0].mxu0
  %v837 = vadd.f32 0.0, %v836
  %v838 = vpop.f32.mrb[0].mxu0
  %v839 = vpop.f32.mrb[0].mxu0
  %v840 = vadd.f32 0.0, %v839
  %v841 = vpop.f32.mrb[0].mxu0
  %842 = vmatprep.mubr.bf16.mxu0 0
  %843 = vmatmul.mubr.bf16.gmra.mrb[0].mxu0 %v502
  %v844 = vpop.f32.mrb[0].mxu0
  %v845 = vadd.f32 0.0, %v844
  %v846 = vpop.f32.mrb[0].mxu0
  %v847 = vpop.f32.mrb[0].mxu0
  %v848 = vadd.f32 0.0, %v847
  %v849 = vpop.f32.mrb[0].mxu0
  %850 = vmatprep.mubr.bf16.mxu0 0
  %851 = vmatmul.mubr.bf16.gmra.mrb[0].mxu0 %v503
  %v852 = vpop.f32.mrb[0].mxu0
  %v853 = vadd.f32 0.0, %v852
  %v854 = vpop.f32.mrb[0].mxu0
  %v855 = vpop.f32.mrb[0].mxu0
  %v856 = vadd.f32 0.0, %v855
  %v857 = vpop.f32.mrb[0].mxu0
  %858 = vmatprep.mubr.bf16.mxu0 0
  %859 = vmatmul.mubr.bf16.gmra.mrb[0].mxu0 %v504
  %v860 = vpop.f32.mrb[0].mxu0
  %v861 = vadd.f32 0.0, %v860
  %v862 = vpop.f32.mrb[0].mxu0
  %v863 = vpop.f32.mrb[0].mxu0
  %v864 = vadd.f32 0.0, %v863
  %v865 = vpop.f32.mrb[0].mxu0
  %866 = vmatprep.mubr.bf16.mxu0 0
  %867 = vmatmul.mubr.bf16.gmra.mrb[0].mxu0 %v505
  %v868 = vpop.f32.mrb[0].mxu0
  %v869 = vadd.f32 0.0, %v868
  %v870 = vpop.f32.mrb[0].mxu0
  %v871 = vpop.f32.mrb[0].mxu0
  %v872 = vadd.f32 0.0, %v871
  %v873 = vpop.f32.mrb[0].mxu0
  %874 = vdwg.mxu0
  %v875 = vrot.slane %v621, 1
  %v876 = vrot.slane %v624, 1
  %v877 = vrot.slane %v629, 1
  %v878 = vrot.slane %v632, 1
  %v879 = vrot.slane %v637, 1
  %v880 = vrot.slane %v640, 1
  %v881 = vrot.slane %v645, 1
  %v882 = vrot.slane %v648, 1
  %v883 = vrot.slane %v653, 1
  %v884 = vrot.slane %v656, 1
  %v885 = vrot.slane %v661, 1
  %v886 = vrot.slane %v664, 1
  %v887 = vrot.slane %v669, 1
  %v888 = vrot.slane %v672, 1
  %v889 = vrot.slane %v677, 1
  %v890 = vrot.slane %v680, 1
  %v891 = vrot.slane %v685, 1
  %v892 = vrot.slane %v688, 1
  %v893 = vrot.slane %v693, 1
  %v894 = vrot.slane %v696, 1
  %v895 = vrot.slane %v701, 1
  %v896 = vrot.slane %v704, 1
  %v897 = vrot.slane %v709, 1
  %v898 = vrot.slane %v712, 1
  %v899 = vrot.slane %v717, 1
  %v900 = vrot.slane %v720, 1
  %v901 = vrot.slane %v725, 1
  %v902 = vrot.slane %v728, 1
  %v903 = vrot.slane %v733, 1
  %v904 = vrot.slane %v736, 1
  %v905 = vrot.slane %v741, 1
  %v906 = vrot.slane %v744, 1
  %v907 = vrot.slane %v749, 1
  %v908 = vrot.slane %v752, 1
  %v909 = vrot.slane %v757, 1
  %v910 = vrot.slane %v760, 1
  %v911 = vrot.slane %v765, 1
  %v912 = vrot.slane %v768, 1
  %v913 = vrot.slane %v773, 1
  %v914 = vrot.slane %v776, 1
  %v915 = vrot.slane %v781, 1
  %v916 = vrot.slane %v784, 1
  %v917 = vrot.slane %v789, 1
  %v918 = vrot.slane %v792, 1
  %v919 = vrot.slane %v797, 1
  %v920 = vrot.slane %v800, 1
  %v921 = vrot.slane %v805, 1
  %v922 = vrot.slane %v808, 1
  %v923 = vrot.slane %v813, 1
  %v924 = vrot.slane %v816, 1
  %v925 = vrot.slane %v821, 1
  %v926 = vrot.slane %v824, 1
  %v927 = vrot.slane %v829, 1
  %v928 = vrot.slane %v832, 1
  %v929 = vrot.slane %v837, 1
  %v930 = vrot.slane %v840, 1
  %v931 = vrot.slane %v845, 1
  %v932 = vrot.slane %v848, 1
  %v933 = vrot.slane %v853, 1
  %v934 = vrot.slane %v856, 1
  %v935 = vrot.slane %v861, 1
  %v936 = vrot.slane %v864, 1
  %v937 = vrot.slane %v869, 1
  %v938 = vrot.slane %v872, 1
  %v939 = vlaneseq
  %v940 = vshrl.u32 %v939, 7
  %vm941 = vcmp.lt.s32.totalorder %v940, 7
  %v942 = vsel %vm941, %v937, %v938
  %v943 = vsel %vm941, %v936, %v937
  %v944 = vsel %vm941, %v935, %v936
  %v945 = vsel %vm941, %v934, %v935
  %v946 = vsel %vm941, %v933, %v934
  %v947 = vsel %vm941, %v932, %v933
  %v948 = vsel %vm941, %v931, %v932
  %v949 = vsel %vm941, %v930, %v931
  %v950 = vsel %vm941, %v929, %v930
  %v951 = vsel %vm941, %v928, %v929
  %v952 = vsel %vm941, %v927, %v928
  %v953 = vsel %vm941, %v926, %v927
  %v954 = vsel %vm941, %v925, %v926
  %v955 = vsel %vm941, %v924, %v925
  %v956 = vsel %vm941, %v923, %v924
  %v957 = vsel %vm941, %v922, %v923
  %v958 = vsel %vm941, %v921, %v922
  %v959 = vsel %vm941, %v920, %v921
  %v960 = vsel %vm941, %v919, %v920
  %v961 = vsel %vm941, %v918, %v919
  %v962 = vsel %vm941, %v917, %v918
  %v963 = vsel %vm941, %v916, %v917
  %v964 = vsel %vm941, %v915, %v916
  %v965 = vsel %vm941, %v914, %v915
  %v966 = vsel %vm941, %v913, %v914
  %v967 = vsel %vm941, %v912, %v913
  %v968 = vsel %vm941, %v911, %v912
  %v969 = vsel %vm941, %v910, %v911
  %v970 = vsel %vm941, %v909, %v910
  %v971 = vsel %vm941, %v908, %v909
  %v972 = vsel %vm941, %v907, %v908
  %v973 = vsel %vm941, %v906, %v907
  %v974 = vsel %vm941, %v905, %v906
  %v975 = vsel %vm941, %v904, %v905
  %v976 = vsel %vm941, %v903, %v904
  %v977 = vsel %vm941, %v902, %v903
  %v978 = vsel %vm941, %v901, %v902
  %v979 = vsel %vm941, %v900, %v901
  %v980 = vsel %vm941, %v899, %v900
  %v981 = vsel %vm941, %v898, %v899
  %v982 = vsel %vm941, %v897, %v898
  %v983 = vsel %vm941, %v896, %v897
  %v984 = vsel %vm941, %v895, %v896
  %v985 = vsel %vm941, %v894, %v895
  %v986 = vsel %vm941, %v893, %v894
  %v987 = vsel %vm941, %v892, %v893
  %v988 = vsel %vm941, %v891, %v892
  %v989 = vsel %vm941, %v890, %v891
  %v990 = vsel %vm941, %v889, %v890
  %v991 = vsel %vm941, %v888, %v889
  %v992 = vsel %vm941, %v887, %v888
  %v993 = vsel %vm941, %v886, %v887
  %v994 = vsel %vm941, %v885, %v886
  %v995 = vsel %vm941, %v884, %v885
  %v996 = vsel %vm941, %v883, %v884
  %v997 = vsel %vm941, %v882, %v883
  %v998 = vsel %vm941, %v881, %v882
  %v999 = vsel %vm941, %v880, %v881
  %v1000 = vsel %vm941, %v879, %v880
  %v1001 = vsel %vm941, %v878, %v879
  %v1002 = vsel %vm941, %v877, %v878
  %v1003 = vsel %vm941, %v876, %v877
  %v1004 = vsel %vm941, %v875, %v876
  %v1005 = vsel %vm941, %v938, %v875
  %v1022 = vunpack.c.l.b16 %v506
  %v1023 = vunpack.c.l.b16 %v507
  %v1024 = vunpack.c.l.b16 %v508
  %v1025 = vunpack.c.l.b16 %v509
  %v1026 = vunpack.c.l.b16 %v510
  %v1027 = vunpack.c.l.b16 %v511
  %v1028 = vunpack.c.l.b16 %v512
  %v1029 = vunpack.c.l.b16 %v513
  %v1030 = vunpack.c.l.b16 %v514
  %v1031 = vunpack.c.l.b16 %v515
  %v1032 = vunpack.c.l.b16 %v516
  %v1033 = vunpack.c.l.b16 %v517
  %v1034 = vunpack.c.l.b16 %v518
  %v1035 = vunpack.c.l.b16 %v519
  %v1036 = vunpack.c.l.b16 %v520
  %v1037 = vunpack.c.l.b16 %v521
  %v1038 = vpack.c.b16 %v1023, %v1022
  %v1039 = vpack.c.b16 %v1025, %v1024
  %v1040 = vpack.c.b16 %v1027, %v1026
  %v1041 = vpack.c.b16 %v1029, %v1028
  %v1042 = vpack.c.b16 %v1031, %v1030
  %v1043 = vpack.c.b16 %v1033, %v1032
  %v1044 = vpack.c.b16 %v1035, %v1034
  %v1045 = vpack.c.b16 %v1037, %v1036
  %1054 = vmatprep.subr.bf16.mxu0 0
  %1055 = vmatpush1.bf16.msra.mxu0 %v1038
  %1056 = vmatprep.subr.bf16.mxu0 0
  %1057 = vmatpush1.bf16.msra.mxu0 %v1039
  %1058 = vmatprep.subr.bf16.mxu0 0
  %1059 = vmatpush1.bf16.msra.mxu0 %v1040
  %1060 = vmatprep.subr.bf16.mxu0 0
  %1061 = vmatpush1.bf16.msra.mxu0 %v1041
  %1062 = vmatprep.subr.bf16.mxu0 0
  %1063 = vmatpush1.bf16.msra.mxu0 %v1042
  %1064 = vmatprep.subr.bf16.mxu0 0
  %1065 = vmatpush1.bf16.msra.mxu0 %v1043
  %1066 = vmatprep.subr.bf16.mxu0 0
  %1067 = vmatpush1.bf16.msra.mxu0 %v1044
  %1068 = vmatprep.subr.bf16.mxu0 0
  %1069 = vmatpush1.bf16.msra.mxu0 %v1045
  %1070 = vmatprep.subr.bf16.mxu0 0
  %1071 = vmatpush1.bf16.msra.mxu0 0
  %1072 = vmatprep.subr.bf16.mxu0 0
  %1073 = vmatpush1.bf16.msra.mxu0 0
  %1074 = vmatprep.subr.bf16.mxu0 0
  %1075 = vmatpush1.bf16.msra.mxu0 0
  %1076 = vmatprep.subr.bf16.mxu0 0
  %1077 = vmatpush1.bf16.msra.mxu0 0
  %1078 = vmatprep.subr.bf16.mxu0 0
  %1079 = vmatpush1.bf16.msra.mxu0 0
  %1080 = vmatprep.subr.bf16.mxu0 0
  %1081 = vmatpush1.bf16.msra.mxu0 0
  %1082 = vmatprep.subr.bf16.mxu0 0
  %1083 = vmatpush1.bf16.msra.mxu0 0
  %1084 = vmatprep.subr.bf16.mxu0 0
  %1085 = vmatpush1.bf16.msra.mxu0 0
  %1086 = vmatprep.mubr.bf16.mxu0 0
  %1087 = vmatmul.mubr.bf16.gmra.mrb[0].mxu0 %v474
  %v1088 = vpop.f32.mrb[0].mxu0
  %v1089 = vadd.f32 %v1004, %v1088
  %v1090 = vpop.f32.mrb[0].mxu0
  %v1091 = vpop.f32.mrb[0].mxu0
  %v1092 = vadd.f32 %v1003, %v1091
  %v1093 = vpop.f32.mrb[0].mxu0
  %1094 = vmatprep.mubr.bf16.mxu0 0
  %1095 = vmatmul.mubr.bf16.gmra.mrb[0].mxu0 %v475
  %v1096 = vpop.f32.mrb[0].mxu0
  %v1097 = vadd.f32 %v1002, %v1096
  %v1098 = vpop.f32.mrb[0].mxu0
  %v1099 = vpop.f32.mrb[0].mxu0
  %v1100 = vadd.f32 %v1001, %v1099
  %v1101 = vpop.f32.mrb[0].mxu0
  %1102 = vmatprep.mubr.bf16.mxu0 0
  %1103 = vmatmul.mubr.bf16.gmra.mrb[0].mxu0 %v476
  %v1104 = vpop.f32.mrb[0].mxu0
  %v1105 = vadd.f32 %v1000, %v1104
  %v1106 = vpop.f32.mrb[0].mxu0
  %v1107 = vpop.f32.mrb[0].mxu0
  %v1108 = vadd.f32 %v999, %v1107
  %v1109 = vpop.f32.mrb[0].mxu0
  %1110 = vmatprep.mubr.bf16.mxu0 0
  %1111 = vmatmul.mubr.bf16.gmra.mrb[0].mxu0 %v477
  %v1112 = vpop.f32.mrb[0].mxu0
  %v1113 = vadd.f32 %v998, %v1112
  %v1114 = vpop.f32.mrb[0].mxu0
  %v1115 = vpop.f32.mrb[0].mxu0
  %v1116 = vadd.f32 %v997, %v1115
  %v1117 = vpop.f32.mrb[0].mxu0
  %1118 = vmatprep.mubr.bf16.mxu0 0
  %1119 = vmatmul.mubr.bf16.gmra.mrb[0].mxu0 %v478
  %v1120 = vpop.f32.mrb[0].mxu0
  %v1121 = vadd.f32 %v996, %v1120
  %v1122 = vpop.f32.mrb[0].mxu0
  %v1123 = vpop.f32.mrb[0].mxu0
  %v1124 = vadd.f32 %v995, %v1123
  %v1125 = vpop.f32.mrb[0].mxu0
  %1126 = vmatprep.mubr.bf16.mxu0 0
  %1127 = vmatmul.mubr.bf16.gmra.mrb[0].mxu0 %v479
  %v1128 = vpop.f32.mrb[0].mxu0
  %v1129 = vadd.f32 %v994, %v1128
  %v1130 = vpop.f32.mrb[0].mxu0
  %v1131 = vpop.f32.mrb[0].mxu0
  %v1132 = vadd.f32 %v993, %v1131
  %v1133 = vpop.f32.mrb[0].mxu0
  %1134 = vmatprep.mubr.bf16.mxu0 0
  %1135 = vmatmul.mubr.bf16.gmra.mrb[0].mxu0 %v480
  %v1136 = vpop.f32.mrb[0].mxu0
  %v1137 = vadd.f32 %v992, %v1136
  %v1138 = vpop.f32.mrb[0].mxu0
  %v1139 = vpop.f32.mrb[0].mxu0
  %v1140 = vadd.f32 %v991, %v1139
  %v1141 = vpop.f32.mrb[0].mxu0
  %1142 = vmatprep.mubr.bf16.mxu0 0
  %1143 = vmatmul.mubr.bf16.gmra.mrb[0].mxu0 %v481
  %v1144 = vpop.f32.mrb[0].mxu0
  %v1145 = vadd.f32 %v990, %v1144
  %v1146 = vpop.f32.mrb[0].mxu0
  %v1147 = vpop.f32.mrb[0].mxu0
  %v1148 = vadd.f32 %v989, %v1147
  %v1149 = vpop.f32.mrb[0].mxu0
  %1150 = vmatprep.mubr.bf16.mxu0 0
  %1151 = vmatmul.mubr.bf16.gmra.mrb[0].mxu0 %v482
  %v1152 = vpop.f32.mrb[0].mxu0
  %v1153 = vadd.f32 %v988, %v1152
  %v1154 = vpop.f32.mrb[0].mxu0
  %v1155 = vpop.f32.mrb[0].mxu0
  %v1156 = vadd.f32 %v987, %v1155
  %v1157 = vpop.f32.mrb[0].mxu0
  %1158 = vmatprep.mubr.bf16.mxu0 0
  %1159 = vmatmul.mubr.bf16.gmra.mrb[0].mxu0 %v483
  %v1160 = vpop.f32.mrb[0].mxu0
  %v1161 = vadd.f32 %v986, %v1160
  %v1162 = vpop.f32.mrb[0].mxu0
  %v1163 = vpop.f32.mrb[0].mxu0
  %v1164 = vadd.f32 %v985, %v1163
  %v1165 = vpop.f32.mrb[0].mxu0
  %1166 = vmatprep.mubr.bf16.mxu0 0
  %1167 = vmatmul.mubr.bf16.gmra.mrb[0].mxu0 %v484
  %v1168 = vpop.f32.mrb[0].mxu0
  %v1169 = vadd.f32 %v984, %v1168
  %v1170 = vpop.f32.mrb[0].mxu0
  %v1171 = vpop.f32.mrb[0].mxu0
  %v1172 = vadd.f32 %v983, %v1171
  %v1173 = vpop.f32.mrb[0].mxu0
  %1174 = vmatprep.mubr.bf16.mxu0 0
  %1175 = vmatmul.mubr.bf16.gmra.mrb[0].mxu0 %v485
  %v1176 = vpop.f32.mrb[0].mxu0
  %v1177 = vadd.f32 %v982, %v1176
  %v1178 = vpop.f32.mrb[0].mxu0
  %v1179 = vpop.f32.mrb[0].mxu0
  %v1180 = vadd.f32 %v981, %v1179
  %v1181 = vpop.f32.mrb[0].mxu0
  %1182 = vmatprep.mubr.bf16.mxu0 0
  %1183 = vmatmul.mubr.bf16.gmra.mrb[0].mxu0 %v486
  %v1184 = vpop.f32.mrb[0].mxu0
  %v1185 = vadd.f32 %v980, %v1184
  %v1186 = vpop.f32.mrb[0].mxu0
  %v1187 = vpop.f32.mrb[0].mxu0
  %v1188 = vadd.f32 %v979, %v1187
  %v1189 = vpop.f32.mrb[0].mxu0
  %1190 = vmatprep.mubr.bf16.mxu0 0
  %1191 = vmatmul.mubr.bf16.gmra.mrb[0].mxu0 %v487
  %v1192 = vpop.f32.mrb[0].mxu0
  %v1193 = vadd.f32 %v978, %v1192
  %v1194 = vpop.f32.mrb[0].mxu0
  %v1195 = vpop.f32.mrb[0].mxu0
  %v1196 = vadd.f32 %v977, %v1195
  %v1197 = vpop.f32.mrb[0].mxu0
  %1198 = vmatprep.mubr.bf16.mxu0 0
  %1199 = vmatmul.mubr.bf16.gmra.mrb[0].mxu0 %v488
  %v1200 = vpop.f32.mrb[0].mxu0
  %v1201 = vadd.f32 %v976, %v1200
  %v1202 = vpop.f32.mrb[0].mxu0
  %v1203 = vpop.f32.mrb[0].mxu0
  %v1204 = vadd.f32 %v975, %v1203
  %v1205 = vpop.f32.mrb[0].mxu0
  %1206 = vmatprep.mubr.bf16.mxu0 0
  %1207 = vmatmul.mubr.bf16.gmra.mrb[0].mxu0 %v489
  %v1208 = vpop.f32.mrb[0].mxu0
  %v1209 = vadd.f32 %v974, %v1208
  %v1210 = vpop.f32.mrb[0].mxu0
  %v1211 = vpop.f32.mrb[0].mxu0
  %v1212 = vadd.f32 %v973, %v1211
  %v1213 = vpop.f32.mrb[0].mxu0
  %1214 = vmatprep.mubr.bf16.mxu0 0
  %1215 = vmatmul.mubr.bf16.gmra.mrb[0].mxu0 %v490
  %v1216 = vpop.f32.mrb[0].mxu0
  %v1217 = vadd.f32 %v972, %v1216
  %v1218 = vpop.f32.mrb[0].mxu0
  %v1219 = vpop.f32.mrb[0].mxu0
  %v1220 = vadd.f32 %v971, %v1219
  %v1221 = vpop.f32.mrb[0].mxu0
  %1222 = vmatprep.mubr.bf16.mxu0 0
  %1223 = vmatmul.mubr.bf16.gmra.mrb[0].mxu0 %v491
  %v1224 = vpop.f32.mrb[0].mxu0
  %v1225 = vadd.f32 %v970, %v1224
  %v1226 = vpop.f32.mrb[0].mxu0
  %v1227 = vpop.f32.mrb[0].mxu0
  %v1228 = vadd.f32 %v969, %v1227
  %v1229 = vpop.f32.mrb[0].mxu0
  %1230 = vmatprep.mubr.bf16.mxu0 0
  %1231 = vmatmul.mubr.bf16.gmra.mrb[0].mxu0 %v492
  %v1232 = vpop.f32.mrb[0].mxu0
  %v1233 = vadd.f32 %v968, %v1232
  %v1234 = vpop.f32.mrb[0].mxu0
  %v1235 = vpop.f32.mrb[0].mxu0
  %v1236 = vadd.f32 %v967, %v1235
  %v1237 = vpop.f32.mrb[0].mxu0
  %1238 = vmatprep.mubr.bf16.mxu0 0
  %1239 = vmatmul.mubr.bf16.gmra.mrb[0].mxu0 %v493
  %v1240 = vpop.f32.mrb[0].mxu0
  %v1241 = vadd.f32 %v966, %v1240
  %v1242 = vpop.f32.mrb[0].mxu0
  %v1243 = vpop.f32.mrb[0].mxu0
  %v1244 = vadd.f32 %v965, %v1243
  %v1245 = vpop.f32.mrb[0].mxu0
  %1246 = vmatprep.mubr.bf16.mxu0 0
  %1247 = vmatmul.mubr.bf16.gmra.mrb[0].mxu0 %v494
  %v1248 = vpop.f32.mrb[0].mxu0
  %v1249 = vadd.f32 %v964, %v1248
  %v1250 = vpop.f32.mrb[0].mxu0
  %v1251 = vpop.f32.mrb[0].mxu0
  %v1252 = vadd.f32 %v963, %v1251
  %v1253 = vpop.f32.mrb[0].mxu0
  %1254 = vmatprep.mubr.bf16.mxu0 0
  %1255 = vmatmul.mubr.bf16.gmra.mrb[0].mxu0 %v495
  %v1256 = vpop.f32.mrb[0].mxu0
  %v1257 = vadd.f32 %v962, %v1256
  %v1258 = vpop.f32.mrb[0].mxu0
  %v1259 = vpop.f32.mrb[0].mxu0
  %v1260 = vadd.f32 %v961, %v1259
  %v1261 = vpop.f32.mrb[0].mxu0
  %1262 = vmatprep.mubr.bf16.mxu0 0
  %1263 = vmatmul.mubr.bf16.gmra.mrb[0].mxu0 %v496
  %v1264 = vpop.f32.mrb[0].mxu0
  %v1265 = vadd.f32 %v960, %v1264
  %v1266 = vpop.f32.mrb[0].mxu0
  %v1267 = vpop.f32.mrb[0].mxu0
  %v1268 = vadd.f32 %v959, %v1267
  %v1269 = vpop.f32.mrb[0].mxu0
  %1270 = vmatprep.mubr.bf16.mxu0 0
  %1271 = vmatmul.mubr.bf16.gmra.mrb[0].mxu0 %v497
  %v1272 = vpop.f32.mrb[0].mxu0
  %v1273 = vadd.f32 %v958, %v1272
  %v1274 = vpop.f32.mrb[0].mxu0
  %v1275 = vpop.f32.mrb[0].mxu0
  %v1276 = vadd.f32 %v957, %v1275
  %v1277 = vpop.f32.mrb[0].mxu0
  %1278 = vmatprep.mubr.bf16.mxu0 0
  %1279 = vmatmul.mubr.bf16.gmra.mrb[0].mxu0 %v498
  %v1280 = vpop.f32.mrb[0].mxu0
  %v1281 = vadd.f32 %v956, %v1280
  %v1282 = vpop.f32.mrb[0].mxu0
  %v1283 = vpop.f32.mrb[0].mxu0
  %v1284 = vadd.f32 %v955, %v1283
  %v1285 = vpop.f32.mrb[0].mxu0
  %1286 = vmatprep.mubr.bf16.mxu0 0
  %1287 = vmatmul.mubr.bf16.gmra.mrb[0].mxu0 %v499
  %v1288 = vpop.f32.mrb[0].mxu0
  %v1289 = vadd.f32 %v954, %v1288
  %v1290 = vpop.f32.mrb[0].mxu0
  %v1291 = vpop.f32.mrb[0].mxu0
  %v1292 = vadd.f32 %v953, %v1291
  %v1293 = vpop.f32.mrb[0].mxu0
  %1294 = vmatprep.mubr.bf16.mxu0 0
  %1295 = vmatmul.mubr.bf16.gmra.mrb[0].mxu0 %v500
  %v1296 = vpop.f32.mrb[0].mxu0
  %v1297 = vadd.f32 %v952, %v1296
  %v1298 = vpop.f32.mrb[0].mxu0
  %v1299 = vpop.f32.mrb[0].mxu0
  %v1300 = vadd.f32 %v951, %v1299
  %v1301 = vpop.f32.mrb[0].mxu0
  %1302 = vmatprep.mubr.bf16.mxu0 0
  %1303 = vmatmul.mubr.bf16.gmra.mrb[0].mxu0 %v501
  %v1304 = vpop.f32.mrb[0].mxu0
  %v1305 = vadd.f32 %v950, %v1304
  %v1306 = vpop.f32.mrb[0].mxu0
  %v1307 = vpop.f32.mrb[0].mxu0
  %v1308 = vadd.f32 %v949, %v1307
  %v1309 = vpop.f32.mrb[0].mxu0
  %1310 = vmatprep.mubr.bf16.mxu0 0
  %1311 = vmatmul.mubr.bf16.gmra.mrb[0].mxu0 %v502
  %v1312 = vpop.f32.mrb[0].mxu0
  %v1313 = vadd.f32 %v948, %v1312
  %v1314 = vpop.f32.mrb[0].mxu0
  %v1315 = vpop.f32.mrb[0].mxu0
  %v1316 = vadd.f32 %v947, %v1315
  %v1317 = vpop.f32.mrb[0].mxu0
  %1318 = vmatprep.mubr.bf16.mxu0 0
  %1319 = vmatmul.mubr.bf16.gmra.mrb[0].mxu0 %v503
  %v1320 = vpop.f32.mrb[0].mxu0
  %v1321 = vadd.f32 %v946, %v1320
  %v1322 = vpop.f32.mrb[0].mxu0
  %v1323 = vpop.f32.mrb[0].mxu0
  %v1324 = vadd.f32 %v945, %v1323
  %v1325 = vpop.f32.mrb[0].mxu0
  %1326 = vmatprep.mubr.bf16.mxu0 0
  %1327 = vmatmul.mubr.bf16.gmra.mrb[0].mxu0 %v504
  %v1328 = vpop.f32.mrb[0].mxu0
  %v1329 = vadd.f32 %v944, %v1328
  %v1330 = vpop.f32.mrb[0].mxu0
  %v1331 = vpop.f32.mrb[0].mxu0
  %v1332 = vadd.f32 %v943, %v1331
  %v1333 = vpop.f32.mrb[0].mxu0
  %1334 = vmatprep.mubr.bf16.mxu0 0
  %1335 = vmatmul.mubr.bf16.gmra.mrb[0].mxu0 %v505
  %v1336 = vpop.f32.mrb[0].mxu0
  %v1337 = vadd.f32 %v942, %v1336
  %v1338 = vpop.f32.mrb[0].mxu0
  %v1339 = vpop.f32.mrb[0].mxu0
  %v1340 = vadd.f32 %v1005, %v1339
  %v1341 = vpop.f32.mrb[0].mxu0
  %1342 = vdwg.mxu0
  %v1343 = vld [vmem:[%s3] sm:$0xff]
  %v1344 = vld [vmem:[%s3 + $0x8] sm:$0xff]
  %v1345 = vld [vmem:[%s3 + $0x10] sm:$0xff]
  %v1346 = vld [vmem:[%s3 + $0x18] sm:$0xff]
  %v1347 = vld [vmem:[%s3 + $0x20] sm:$0xff]
  %v1348 = vld [vmem:[%s3 + $0x28] sm:$0xff]
  %v1349 = vld [vmem:[%s3 + $0x30] sm:$0xff]
  %v1350 = vld [vmem:[%s3 + $0x38] sm:$0xff]
  %v1351 = vadd.f32 %v1089, %v1343
  %v1352 = vadd.f32 %v1092, %v1344
  %v1353 = vadd.f32 %v1097, %v1345
  %v1354 = vadd.f32 %v1100, %v1346
  %v1355 = vadd.f32 %v1105, %v1347
  %v1356 = vadd.f32 %v1108, %v1348
  %v1357 = vadd.f32 %v1113, %v1349
  %v1358 = vadd.f32 %v1116, %v1350
  %v1359 = vadd.f32 %v1121, %v1343
  %v1360 = vadd.f32 %v1124, %v1344
  %v1361 = vadd.f32 %v1129, %v1345
  %v1362 = vadd.f32 %v1132, %v1346
  %v1363 = vadd.f32 %v1137, %v1347
  %v1364 = vadd.f32 %v1140, %v1348
  %v1365 = vadd.f32 %v1145, %v1349
  %v1366 = vadd.f32 %v1148, %v1350
  %v1367 = vadd.f32 %v1153, %v1343
  %v1368 = vadd.f32 %v1156, %v1344
  %v1369 = vadd.f32 %v1161, %v1345
  %v1370 = vadd.f32 %v1164, %v1346
  %v1371 = vadd.f32 %v1169, %v1347
  %v1372 = vadd.f32 %v1172, %v1348
  %v1373 = vadd.f32 %v1177, %v1349
  %v1374 = vadd.f32 %v1180, %v1350
  %v1375 = vadd.f32 %v1185, %v1343
  %v1376 = vadd.f32 %v1188, %v1344
  %v1377 = vadd.f32 %v1193, %v1345
  %v1378 = vadd.f32 %v1196, %v1346
  %v1379 = vadd.f32 %v1201, %v1347
  %v1380 = vadd.f32 %v1204, %v1348
  %v1381 = vadd.f32 %v1209, %v1349
  %v1382 = vadd.f32 %v1212, %v1350
  %v1383 = vadd.f32 %v1217, %v1343
  %v1384 = vadd.f32 %v1220, %v1344
  %v1385 = vadd.f32 %v1225, %v1345
  %v1386 = vadd.f32 %v1228, %v1346
  %v1387 = vadd.f32 %v1233, %v1347
  %v1388 = vadd.f32 %v1236, %v1348
  %v1389 = vadd.f32 %v1241, %v1349
  %v1390 = vadd.f32 %v1244, %v1350
  %v1391 = vadd.f32 %v1249, %v1343
  %v1392 = vadd.f32 %v1252, %v1344
  %v1393 = vadd.f32 %v1257, %v1345
  %v1394 = vadd.f32 %v1260, %v1346
  %v1395 = vadd.f32 %v1265, %v1347
  %v1396 = vadd.f32 %v1268, %v1348
  %v1397 = vadd.f32 %v1273, %v1349
  %v1398 = vadd.f32 %v1276, %v1350
  %v1399 = vadd.f32 %v1281, %v1343
  %v1400 = vadd.f32 %v1284, %v1344
  %v1401 = vadd.f32 %v1289, %v1345
  %v1402 = vadd.f32 %v1292, %v1346
  %v1403 = vadd.f32 %v1297, %v1347
  %v1404 = vadd.f32 %v1300, %v1348
  %v1405 = vadd.f32 %v1305, %v1349
  %v1406 = vadd.f32 %v1308, %v1350
  %v1407 = vadd.f32 %v1313, %v1343
  %v1408 = vadd.f32 %v1316, %v1344
  %v1409 = vadd.f32 %v1321, %v1345
  %v1410 = vadd.f32 %v1324, %v1346
  %v1411 = vadd.f32 %v1329, %v1347
  %v1412 = vadd.f32 %v1332, %v1348
  %v1413 = vadd.f32 %v1337, %v1349
  %v1414 = vadd.f32 %v1340, %v1350
  %vm1415 = vcmask 48128
  %v1416 = vsel %vm1415, %v1351, -inf
  %v1417 = vsel %vm1415, %v1352, -inf
  %v1418 = vmax.f32 %v1416, %v1417
  %v1419 = vsel %vm1415, %v1353, -inf
  %v1420 = vmax.f32 %v1418, %v1419
  %v1421 = vsel %vm1415, %v1354, -inf
  %v1422 = vmax.f32 %v1420, %v1421
  %v1423 = vsel %vm1415, %v1355, -inf
  %v1424 = vmax.f32 %v1422, %v1423
  %v1425 = vsel %vm1415, %v1356, -inf
  %v1426 = vmax.f32 %v1424, %v1425
  %v1427 = vsel %vm1415, %v1357, -inf
  %v1428 = vmax.f32 %v1426, %v1427
  %v1429 = vsel %vm1415, %v1358, -inf
  %v1430 = vmax.f32 %v1428, %v1429
  %v1431 = vrot.slane %v1430, 4
  %v1432 = vmax.f32 %v1430, %v1431
  %v1433 = vrot.slane %v1432, 2
  %v1434 = vmax.f32 %v1432, %v1433
  %v1435 = vrot.slane %v1434, 1
  %v1436 = vmax.f32 %v1434, %v1435
  %v1437 = vsel %vm1415, %v1359, -inf
  %v1438 = vsel %vm1415, %v1360, -inf
  %v1439 = vmax.f32 %v1437, %v1438
  %v1440 = vsel %vm1415, %v1361, -inf
  %v1441 = vmax.f32 %v1439, %v1440
  %v1442 = vsel %vm1415, %v1362, -inf
  %v1443 = vmax.f32 %v1441, %v1442
  %v1444 = vsel %vm1415, %v1363, -inf
  %v1445 = vmax.f32 %v1443, %v1444
  %v1446 = vsel %vm1415, %v1364, -inf
  %v1447 = vmax.f32 %v1445, %v1446
  %v1448 = vsel %vm1415, %v1365, -inf
  %v1449 = vmax.f32 %v1447, %v1448
  %v1450 = vsel %vm1415, %v1366, -inf
  %v1451 = vmax.f32 %v1449, %v1450
  %v1452 = vrot.slane %v1451, 4
  %v1453 = vmax.f32 %v1451, %v1452
  %v1454 = vrot.slane %v1453, 2
  %v1455 = vmax.f32 %v1453, %v1454
  %v1456 = vrot.slane %v1455, 1
  %v1457 = vmax.f32 %v1455, %v1456
  %v1458 = vsel %vm1415, %v1367, -inf
  %v1459 = vsel %vm1415, %v1368, -inf
  %v1460 = vmax.f32 %v1458, %v1459
  %v1461 = vsel %vm1415, %v1369, -inf
  %v1462 = vmax.f32 %v1460, %v1461
  %v1463 = vsel %vm1415, %v1370, -inf
  %v1464 = vmax.f32 %v1462, %v1463
  %v1465 = vsel %vm1415, %v1371, -inf
  %v1466 = vmax.f32 %v1464, %v1465
  %v1467 = vsel %vm1415, %v1372, -inf
  %v1468 = vmax.f32 %v1466, %v1467
  %v1469 = vsel %vm1415, %v1373, -inf
  %v1470 = vmax.f32 %v1468, %v1469
  %v1471 = vsel %vm1415, %v1374, -inf
  %v1472 = vmax.f32 %v1470, %v1471
  %v1473 = vrot.slane %v1472, 4
  %v1474 = vmax.f32 %v1472, %v1473
  %v1475 = vrot.slane %v1474, 2
  %v1476 = vmax.f32 %v1474, %v1475
  %v1477 = vrot.slane %v1476, 1
  %v1478 = vmax.f32 %v1476, %v1477
  %v1479 = vsel %vm1415, %v1375, -inf
  %v1480 = vsel %vm1415, %v1376, -inf
  %v1481 = vmax.f32 %v1479, %v1480
  %v1482 = vsel %vm1415, %v1377, -inf
  %v1483 = vmax.f32 %v1481, %v1482
  %v1484 = vsel %vm1415, %v1378, -inf
  %v1485 = vmax.f32 %v1483, %v1484
  %v1486 = vsel %vm1415, %v1379, -inf
  %v1487 = vmax.f32 %v1485, %v1486
  %v1488 = vsel %vm1415, %v1380, -inf
  %v1489 = vmax.f32 %v1487, %v1488
  %v1490 = vsel %vm1415, %v1381, -inf
  %v1491 = vmax.f32 %v1489, %v1490
  %v1492 = vsel %vm1415, %v1382, -inf
  %v1493 = vmax.f32 %v1491, %v1492
  %v1494 = vrot.slane %v1493, 4
  %v1495 = vmax.f32 %v1493, %v1494
  %v1496 = vrot.slane %v1495, 2
  %v1497 = vmax.f32 %v1495, %v1496
  %v1498 = vrot.slane %v1497, 1
  %v1499 = vmax.f32 %v1497, %v1498
  %v1500 = vsel %vm1415, %v1383, -inf
  %v1501 = vsel %vm1415, %v1384, -inf
  %v1502 = vmax.f32 %v1500, %v1501
  %v1503 = vsel %vm1415, %v1385, -inf
  %v1504 = vmax.f32 %v1502, %v1503
  %v1505 = vsel %vm1415, %v1386, -inf
  %v1506 = vmax.f32 %v1504, %v1505
  %v1507 = vsel %vm1415, %v1387, -inf
  %v1508 = vmax.f32 %v1506, %v1507
  %v1509 = vsel %vm1415, %v1388, -inf
  %v1510 = vmax.f32 %v1508, %v1509
  %v1511 = vsel %vm1415, %v1389, -inf
  %v1512 = vmax.f32 %v1510, %v1511
  %v1513 = vsel %vm1415, %v1390, -inf
  %v1514 = vmax.f32 %v1512, %v1513
  %v1515 = vrot.slane %v1514, 4
  %v1516 = vmax.f32 %v1514, %v1515
  %v1517 = vrot.slane %v1516, 2
  %v1518 = vmax.f32 %v1516, %v1517
  %v1519 = vrot.slane %v1518, 1
  %v1520 = vmax.f32 %v1518, %v1519
  %v1521 = vsel %vm1415, %v1391, -inf
  %v1522 = vsel %vm1415, %v1392, -inf
  %v1523 = vmax.f32 %v1521, %v1522
  %v1524 = vsel %vm1415, %v1393, -inf
  %v1525 = vmax.f32 %v1523, %v1524
  %v1526 = vsel %vm1415, %v1394, -inf
  %v1527 = vmax.f32 %v1525, %v1526
  %v1528 = vsel %vm1415, %v1395, -inf
  %v1529 = vmax.f32 %v1527, %v1528
  %v1530 = vsel %vm1415, %v1396, -inf
  %v1531 = vmax.f32 %v1529, %v1530
  %v1532 = vsel %vm1415, %v1397, -inf
  %v1533 = vmax.f32 %v1531, %v1532
  %v1534 = vsel %vm1415, %v1398, -inf
  %v1535 = vmax.f32 %v1533, %v1534
  %v1536 = vrot.slane %v1535, 4
  %v1537 = vmax.f32 %v1535, %v1536
  %v1538 = vrot.slane %v1537, 2
  %v1539 = vmax.f32 %v1537, %v1538
  %v1540 = vrot.slane %v1539, 1
  %v1541 = vmax.f32 %v1539, %v1540
  %v1542 = vsel %vm1415, %v1399, -inf
  %v1543 = vsel %vm1415, %v1400, -inf
  %v1544 = vmax.f32 %v1542, %v1543
  %v1545 = vsel %vm1415, %v1401, -inf
  %v1546 = vmax.f32 %v1544, %v1545
  %v1547 = vsel %vm1415, %v1402, -inf
  %v1548 = vmax.f32 %v1546, %v1547
  %v1549 = vsel %vm1415, %v1403, -inf
  %v1550 = vmax.f32 %v1548, %v1549
  %v1551 = vsel %vm1415, %v1404, -inf
  %v1552 = vmax.f32 %v1550, %v1551
  %v1553 = vsel %vm1415, %v1405, -inf
  %v1554 = vmax.f32 %v1552, %v1553
  %v1555 = vsel %vm1415, %v1406, -inf
  %v1556 = vmax.f32 %v1554, %v1555
  %v1557 = vrot.slane %v1556, 4
  %v1558 = vmax.f32 %v1556, %v1557
  %v1559 = vrot.slane %v1558, 2
  %v1560 = vmax.f32 %v1558, %v1559
  %v1561 = vrot.slane %v1560, 1
  %v1562 = vmax.f32 %v1560, %v1561
  %v1563 = vsel %vm1415, %v1407, -inf
  %v1564 = vsel %vm1415, %v1408, -inf
  %v1565 = vmax.f32 %v1563, %v1564
  %v1566 = vsel %vm1415, %v1409, -inf
  %v1567 = vmax.f32 %v1565, %v1566
  %v1568 = vsel %vm1415, %v1410, -inf
  %v1569 = vmax.f32 %v1567, %v1568
  %v1570 = vsel %vm1415, %v1411, -inf
  %v1571 = vmax.f32 %v1569, %v1570
  %v1572 = vsel %vm1415, %v1412, -inf
  %v1573 = vmax.f32 %v1571, %v1572
  %v1574 = vsel %vm1415, %v1413, -inf
  %v1575 = vmax.f32 %v1573, %v1574
  %v1576 = vsel %vm1415, %v1414, -inf
  %v1577 = vmax.f32 %v1575, %v1576
  %v1578 = vrot.slane %v1577, 4
  %v1579 = vmax.f32 %v1577, %v1578
  %v1580 = vrot.slane %v1579, 2
  %v1581 = vmax.f32 %v1579, %v1580
  %v1582 = vrot.slane %v1581, 1
  %v1583 = vmax.f32 %v1581, %v1582
  %v1584 = vmax.f32 %v1436, 0.0
  %v1585 = vmax.f32 %v1457, 0.0
  %v1586 = vmax.f32 %v1478, 0.0
  %v1587 = vmax.f32 %v1499, 0.0
  %v1588 = vmax.f32 %v1520, 0.0
  %v1589 = vmax.f32 %v1541, 0.0
  %v1590 = vmax.f32 %v1562, 0.0
  %v1591 = vmax.f32 %v1583, 0.0
  %v1592 = vld [vmem:[%s4] sm:$0x3f]
  %v1593 = vld [vmem:[%s5] sm:$0x1]
  %1595 = vset.pattern.permute.xlu0 0
  %1596 = vperm.xlu0 %1595, %v1584
  %v1597 = vpop.permute.xlu0 %1596
  %1600 = vset.pattern.permute.xlu0 0
  %1601 = vperm.xlu0 %1600, %v1585
  %v1602 = vpop.permute.xlu0 %1601
  %1605 = vset.pattern.permute.xlu0 0
  %1606 = vperm.xlu0 %1605, %v1586
  %v1607 = vpop.permute.xlu0 %1606
  %1610 = vset.pattern.permute.xlu0 0
  %1611 = vperm.xlu0 %1610, %v1587
  %v1612 = vpop.permute.xlu0 %1611
  %1615 = vset.pattern.permute.xlu0 0
  %1616 = vperm.xlu0 %1615, %v1588
  %v1617 = vpop.permute.xlu0 %1616
  %1620 = vset.pattern.permute.xlu0 0
  %1621 = vperm.xlu0 %1620, %v1589
  %v1622 = vpop.permute.xlu0 %1621
  %1625 = vset.pattern.permute.xlu0 0
  %1626 = vperm.xlu0 %1625, %v1590
  %v1627 = vpop.permute.xlu0 %1626
  %1630 = vset.pattern.permute.xlu0 0
  %1631 = vperm.xlu0 %1630, %v1591
  %v1632 = vpop.permute.xlu0 %1631
  %v1634 = vlaneseq
  %v1635 = vshrl.u32 %v1634, 7
  %v1636 = vsub.s32 0, %v1635
  %v1637 = vrot.slane %v1592, %v1636
  %v1638 = vmul.f32 %v1597, %v1637
  %v1639 = vmul.f32 %v1602, %v1637
  %v1640 = vmul.f32 %v1607, %v1637
  %v1641 = vmul.f32 %v1612, %v1637
  %v1642 = vmul.f32 %v1617, %v1637
  %v1643 = vmul.f32 %v1622, %v1637
  %v1644 = vmul.f32 %v1627, %v1637
  %v1645 = vmul.f32 %v1632, %v1637
  %v1647 = vlaneseq
  %v1648 = vshrl.u32 %v1647, 7
  %v1649 = vsub.s32 0, %v1648
  %v1650 = vrot.slane %v1593, %v1649
  %v1660 = vrot.slane %v1639, 7
  %vm1661 = vcmask 1041409
  %v1662 = vsel %vm1661, %v1660, %v1638
  %v1663 = vrot.slane %v1640, 6
  %vm1664 = vcmask 1042434
  %v1665 = vsel %vm1664, %v1663, %v1662
  %v1666 = vrot.slane %v1641, 5
  %vm1667 = vcmask 1043459
  %v1668 = vsel %vm1667, %v1666, %v1665
  %v1669 = vrot.slane %v1642, 4
  %vm1670 = vcmask 1044484
  %v1671 = vsel %vm1670, %v1669, %v1668
  %v1672 = vrot.slane %v1643, 3
  %vm1673 = vcmask 1045509
  %v1674 = vsel %vm1673, %v1672, %v1671
  %v1675 = vrot.slane %v1644, 2
  %vm1676 = vcmask 1046534
  %v1677 = vsel %vm1676, %v1675, %v1674
  %v1678 = vrot.slane %v1645, 1
  %vm1679 = vcmask 1047559
  %v1680 = vsel %vm1679, %v1678, %v1677
  %v1682 = vadd.f32 %v1650, %v1680
  %1683 = vset.pattern.permute.xlu0 1
  %1684 = vperm.xlu0 %1683, %v1584
  %v1685 = vpop.permute.xlu0 %1684
  %1687 = vset.pattern.permute.xlu0 1
  %1688 = vperm.xlu0 %1687, %v1585
  %v1689 = vpop.permute.xlu0 %1688
  %1691 = vset.pattern.permute.xlu0 1
  %1692 = vperm.xlu0 %1691, %v1586
  %v1693 = vpop.permute.xlu0 %1692
  %1695 = vset.pattern.permute.xlu0 1
  %1696 = vperm.xlu0 %1695, %v1587
  %v1697 = vpop.permute.xlu0 %1696
  %1699 = vset.pattern.permute.xlu0 1
  %1700 = vperm.xlu0 %1699, %v1588
  %v1701 = vpop.permute.xlu0 %1700
  %1703 = vset.pattern.permute.xlu0 1
  %1704 = vperm.xlu0 %1703, %v1589
  %v1705 = vpop.permute.xlu0 %1704
  %1707 = vset.pattern.permute.xlu0 1
  %1708 = vperm.xlu0 %1707, %v1590
  %v1709 = vpop.permute.xlu0 %1708
  %1711 = vset.pattern.permute.xlu0 1
  %1712 = vperm.xlu0 %1711, %v1591
  %v1713 = vpop.permute.xlu0 %1712
  %v1715 = vlaneseq
  %v1716 = vshrl.u32 %v1715, 7
  %v1717 = vsub.s32 1, %v1716
  %v1718 = vrot.slane %v1592, %v1717
  %v1719 = vmul.f32 %v1685, %v1718
  %v1720 = vmul.f32 %v1689, %v1718
  %v1721 = vmul.f32 %v1693, %v1718
  %v1722 = vmul.f32 %v1697, %v1718
  %v1723 = vmul.f32 %v1701, %v1718
  %v1724 = vmul.f32 %v1705, %v1718
  %v1725 = vmul.f32 %v1709, %v1718
  %v1726 = vmul.f32 %v1713, %v1718
  %v1735 = vrot.slane %v1720, 7
  %v1736 = vsel %vm1661, %v1735, %v1719
  %v1737 = vrot.slane %v1721, 6
  %v1738 = vsel %vm1664, %v1737, %v1736
  %v1739 = vrot.slane %v1722, 5
  %v1740 = vsel %vm1667, %v1739, %v1738
  %v1741 = vrot.slane %v1723, 4
  %v1742 = vsel %vm1670, %v1741, %v1740
  %v1743 = vrot.slane %v1724, 3
  %v1744 = vsel %vm1673, %v1743, %v1742
  %v1745 = vrot.slane %v1725, 2
  %v1746 = vsel %vm1676, %v1745, %v1744
  %v1747 = vrot.slane %v1726, 1
  %v1748 = vsel %vm1679, %v1747, %v1746
  %v1750 = vadd.f32 %v1682, %v1748
  %1751 = vset.pattern.permute.xlu0 2
  %1752 = vperm.xlu0 %1751, %v1584
  %v1753 = vpop.permute.xlu0 %1752
  %1755 = vset.pattern.permute.xlu0 2
  %1756 = vperm.xlu0 %1755, %v1585
  %v1757 = vpop.permute.xlu0 %1756
  %1759 = vset.pattern.permute.xlu0 2
  %1760 = vperm.xlu0 %1759, %v1586
  %v1761 = vpop.permute.xlu0 %1760
  %1763 = vset.pattern.permute.xlu0 2
  %1764 = vperm.xlu0 %1763, %v1587
  %v1765 = vpop.permute.xlu0 %1764
  %1767 = vset.pattern.permute.xlu0 2
  %1768 = vperm.xlu0 %1767, %v1588
  %v1769 = vpop.permute.xlu0 %1768
  %1771 = vset.pattern.permute.xlu0 2
  %1772 = vperm.xlu0 %1771, %v1589
  %v1773 = vpop.permute.xlu0 %1772
  %1775 = vset.pattern.permute.xlu0 2
  %1776 = vperm.xlu0 %1775, %v1590
  %v1777 = vpop.permute.xlu0 %1776
  %1779 = vset.pattern.permute.xlu0 2
  %1780 = vperm.xlu0 %1779, %v1591
  %v1781 = vpop.permute.xlu0 %1780
  %v1783 = vlaneseq
  %v1784 = vshrl.u32 %v1783, 7
  %v1785 = vsub.s32 2, %v1784
  %v1786 = vrot.slane %v1592, %v1785
  %v1787 = vmul.f32 %v1753, %v1786
  %v1788 = vmul.f32 %v1757, %v1786
  %v1789 = vmul.f32 %v1761, %v1786
  %v1790 = vmul.f32 %v1765, %v1786
  %v1791 = vmul.f32 %v1769, %v1786
  %v1792 = vmul.f32 %v1773, %v1786
  %v1793 = vmul.f32 %v1777, %v1786
  %v1794 = vmul.f32 %v1781, %v1786
  %v1803 = vrot.slane %v1788, 7
  %v1804 = vsel %vm1661, %v1803, %v1787
  %v1805 = vrot.slane %v1789, 6
  %v1806 = vsel %vm1664, %v1805, %v1804
  %v1807 = vrot.slane %v1790, 5
  %v1808 = vsel %vm1667, %v1807, %v1806
  %v1809 = vrot.slane %v1791, 4
  %v1810 = vsel %vm1670, %v1809, %v1808
  %v1811 = vrot.slane %v1792, 3
  %v1812 = vsel %vm1673, %v1811, %v1810
  %v1813 = vrot.slane %v1793, 2
  %v1814 = vsel %vm1676, %v1813, %v1812
  %v1815 = vrot.slane %v1794, 1
  %v1816 = vsel %vm1679, %v1815, %v1814
  %v1818 = vadd.f32 %v1750, %v1816
  %1819 = vset.pattern.permute.xlu0 3
  %1820 = vperm.xlu0 %1819, %v1584
  %v1821 = vpop.permute.xlu0 %1820
  %1823 = vset.pattern.permute.xlu0 3
  %1824 = vperm.xlu0 %1823, %v1585
  %v1825 = vpop.permute.xlu0 %1824
  %1827 = vset.pattern.permute.xlu0 3
  %1828 = vperm.xlu0 %1827, %v1586
  %v1829 = vpop.permute.xlu0 %1828
  %1831 = vset.pattern.permute.xlu0 3
  %1832 = vperm.xlu0 %1831, %v1587
  %v1833 = vpop.permute.xlu0 %1832
  %1835 = vset.pattern.permute.xlu0 3
  %1836 = vperm.xlu0 %1835, %v1588
  %v1837 = vpop.permute.xlu0 %1836
  %1839 = vset.pattern.permute.xlu0 3
  %1840 = vperm.xlu0 %1839, %v1589
  %v1841 = vpop.permute.xlu0 %1840
  %1843 = vset.pattern.permute.xlu0 3
  %1844 = vperm.xlu0 %1843, %v1590
  %v1845 = vpop.permute.xlu0 %1844
  %1847 = vset.pattern.permute.xlu0 3
  %1848 = vperm.xlu0 %1847, %v1591
  %v1849 = vpop.permute.xlu0 %1848
  %v1851 = vlaneseq
  %v1852 = vshrl.u32 %v1851, 7
  %v1853 = vsub.s32 3, %v1852
  %v1854 = vrot.slane %v1592, %v1853
  %v1855 = vmul.f32 %v1821, %v1854
  %v1856 = vmul.f32 %v1825, %v1854
  %v1857 = vmul.f32 %v1829, %v1854
  %v1858 = vmul.f32 %v1833, %v1854
  %v1859 = vmul.f32 %v1837, %v1854
  %v1860 = vmul.f32 %v1841, %v1854
  %v1861 = vmul.f32 %v1845, %v1854
  %v1862 = vmul.f32 %v1849, %v1854
  %v1871 = vrot.slane %v1856, 7
  %v1872 = vsel %vm1661, %v1871, %v1855
  %v1873 = vrot.slane %v1857, 6
  %v1874 = vsel %vm1664, %v1873, %v1872
  %v1875 = vrot.slane %v1858, 5
  %v1876 = vsel %vm1667, %v1875, %v1874
  %v1877 = vrot.slane %v1859, 4
  %v1878 = vsel %vm1670, %v1877, %v1876
  %v1879 = vrot.slane %v1860, 3
  %v1880 = vsel %vm1673, %v1879, %v1878
  %v1881 = vrot.slane %v1861, 2
  %v1882 = vsel %vm1676, %v1881, %v1880
  %v1883 = vrot.slane %v1862, 1
  %v1884 = vsel %vm1679, %v1883, %v1882
  %v1886 = vadd.f32 %v1818, %v1884
  %1887 = vset.pattern.permute.xlu0 4
  %1888 = vperm.xlu0 %1887, %v1584
  %v1889 = vpop.permute.xlu0 %1888
  %1891 = vset.pattern.permute.xlu0 4
  %1892 = vperm.xlu0 %1891, %v1585
  %v1893 = vpop.permute.xlu0 %1892
  %1895 = vset.pattern.permute.xlu0 4
  %1896 = vperm.xlu0 %1895, %v1586
  %v1897 = vpop.permute.xlu0 %1896
  %1899 = vset.pattern.permute.xlu0 4
  %1900 = vperm.xlu0 %1899, %v1587
  %v1901 = vpop.permute.xlu0 %1900
  %1903 = vset.pattern.permute.xlu0 4
  %1904 = vperm.xlu0 %1903, %v1588
  %v1905 = vpop.permute.xlu0 %1904
  %1907 = vset.pattern.permute.xlu0 4
  %1908 = vperm.xlu0 %1907, %v1589
  %v1909 = vpop.permute.xlu0 %1908
  %1911 = vset.pattern.permute.xlu0 4
  %1912 = vperm.xlu0 %1911, %v1590
  %v1913 = vpop.permute.xlu0 %1912
  %1915 = vset.pattern.permute.xlu0 4
  %1916 = vperm.xlu0 %1915, %v1591
  %v1917 = vpop.permute.xlu0 %1916
  %v1919 = vlaneseq
  %v1920 = vshrl.u32 %v1919, 7
  %v1921 = vsub.s32 4, %v1920
  %v1922 = vrot.slane %v1592, %v1921
  %v1923 = vmul.f32 %v1889, %v1922
  %v1924 = vmul.f32 %v1893, %v1922
  %v1925 = vmul.f32 %v1897, %v1922
  %v1926 = vmul.f32 %v1901, %v1922
  %v1927 = vmul.f32 %v1905, %v1922
  %v1928 = vmul.f32 %v1909, %v1922
  %v1929 = vmul.f32 %v1913, %v1922
  %v1930 = vmul.f32 %v1917, %v1922
  %v1939 = vrot.slane %v1924, 7
  %v1940 = vsel %vm1661, %v1939, %v1923
  %v1941 = vrot.slane %v1925, 6
  %v1942 = vsel %vm1664, %v1941, %v1940
  %v1943 = vrot.slane %v1926, 5
  %v1944 = vsel %vm1667, %v1943, %v1942
  %v1945 = vrot.slane %v1927, 4
  %v1946 = vsel %vm1670, %v1945, %v1944
  %v1947 = vrot.slane %v1928, 3
  %v1948 = vsel %vm1673, %v1947, %v1946
  %v1949 = vrot.slane %v1929, 2
  %v1950 = vsel %vm1676, %v1949, %v1948
  %v1951 = vrot.slane %v1930, 1
  %v1952 = vsel %vm1679, %v1951, %v1950
  %v1954 = vadd.f32 %v1886, %v1952
  %1955 = vset.pattern.permute.xlu0 5
  %1956 = vperm.xlu0 %1955, %v1584
  %v1957 = vpop.permute.xlu0 %1956
  %1959 = vset.pattern.permute.xlu0 5
  %1960 = vperm.xlu0 %1959, %v1585
  %v1961 = vpop.permute.xlu0 %1960
  %1963 = vset.pattern.permute.xlu0 5
  %1964 = vperm.xlu0 %1963, %v1586
  %v1965 = vpop.permute.xlu0 %1964
  %1967 = vset.pattern.permute.xlu0 5
  %1968 = vperm.xlu0 %1967, %v1587
  %v1969 = vpop.permute.xlu0 %1968
  %1971 = vset.pattern.permute.xlu0 5
  %1972 = vperm.xlu0 %1971, %v1588
  %v1973 = vpop.permute.xlu0 %1972
  %1975 = vset.pattern.permute.xlu0 5
  %1976 = vperm.xlu0 %1975, %v1589
  %v1977 = vpop.permute.xlu0 %1976
  %1979 = vset.pattern.permute.xlu0 5
  %1980 = vperm.xlu0 %1979, %v1590
  %v1981 = vpop.permute.xlu0 %1980
  %1983 = vset.pattern.permute.xlu0 5
  %1984 = vperm.xlu0 %1983, %v1591
  %v1985 = vpop.permute.xlu0 %1984
  %v1987 = vlaneseq
  %v1988 = vshrl.u32 %v1987, 7
  %v1989 = vsub.s32 5, %v1988
  %v1990 = vrot.slane %v1592, %v1989
  %v1991 = vmul.f32 %v1957, %v1990
  %v1992 = vmul.f32 %v1961, %v1990
  %v1993 = vmul.f32 %v1965, %v1990
  %v1994 = vmul.f32 %v1969, %v1990
  %v1995 = vmul.f32 %v1973, %v1990
  %v1996 = vmul.f32 %v1977, %v1990
  %v1997 = vmul.f32 %v1981, %v1990
  %v1998 = vmul.f32 %v1985, %v1990
  %v2007 = vrot.slane %v1992, 7
  %v2008 = vsel %vm1661, %v2007, %v1991
  %v2009 = vrot.slane %v1993, 6
  %v2010 = vsel %vm1664, %v2009, %v2008
  %v2011 = vrot.slane %v1994, 5
  %v2012 = vsel %vm1667, %v2011, %v2010
  %v2013 = vrot.slane %v1995, 4
  %v2014 = vsel %vm1670, %v2013, %v2012
  %v2015 = vrot.slane %v1996, 3
  %v2016 = vsel %vm1673, %v2015, %v2014
  %v2017 = vrot.slane %v1997, 2
  %v2018 = vsel %vm1676, %v2017, %v2016
  %v2019 = vrot.slane %v1998, 1
  %v2020 = vsel %vm1679, %v2019, %v2018
  %v2022 = vadd.f32 %v1954, %v2020
  %2023 = vst [vmem:[%s6] sm:$0xff] %v2022
  // Predicated region
  $region26: #{textcnn_forward.1} parent=0 // pred_check
    _
  $region27: #{textcnn_forward.1} parent=0 // pred_check_branch
    %2025 = sbr.rel (0) target = $region29
  $region28: #{textcnn_forward.1} parent=0 // pred_region
    _
  $region29: #{textcnn_forward.1} parent=0 // pred_fallthru
    _
  // Predicated region
  $region30: #{textcnn_forward.1} parent=0 // pred_check
    _
  $region31: #{textcnn_forward.1} parent=0 // pred_check_branch
    %2027 = sbr.rel (0) target = $region33
  $region32: #{textcnn_forward.1} parent=0 // pred_region
    _
  $region33: #{textcnn_forward.1} parent=0 // pred_fallthru
    _

</llo_original>
